<compile_context>
chip_gen: v5e
topology: v5e:2x2
jax: 0.10.0
libtpu: 0.0.40
codegen_flags: <defaults>
</compile_context>

<pallas_src>
from functools import partial

import jax
import jax.numpy as jnp
from jax.experimental import pallas as pl
from jax.experimental.pallas import tpu as pltpu


# Row indices of the packed (8, C) small-parameter slab.
_ALPHA1, _BETA1, _ALPHA2, _BETA2, _B2, _LS1, _LS2 = range(7)
_NUM_VEC_ROWS = 8  # padded to a full sublane group


def resblock_kernel(x_ref, pv_ref, wt_ref, btb_ref, w1t_ref, bb1_ref, w2t_ref,
                    o_ref, *, h_chunk, approximate_gelu):
    """One grid step: a (TB, N, C) slab of the batch; params VMEM-resident.

    Elementwise math stays f32 (v5e has no bf16 VPU/EUP path); only MXU
    operands are bf16, accumulating in f32.
    """
    f32, bf16 = jnp.float32, jnp.bfloat16
    tb, n, c = x_ref.shape
    hdim = w1t_ref.shape[1]

    pv = pv_ref[...]                                   # (8, C) packed vectors
    alpha1, beta1 = pv[_ALPHA1:_ALPHA1 + 1], pv[_BETA1:_BETA1 + 1]
    alpha2, beta2 = pv[_ALPHA2:_ALPHA2 + 1], pv[_BETA2:_BETA2 + 1]
    b2 = pv[_B2:_B2 + 1]
    ls1, ls2 = pv[_LS1:_LS1 + 1], pv[_LS2:_LS2 + 1]

    x = x_ref[...].astype(f32)                         # (TB, N, C)

    # ---- token-mixing branch: ONE matmul over an (N, TB*C) lane-wide view ---
    u = (beta1 + alpha1 * x).astype(bf16)              # norm1 (Affine)
    if tb == 1:
        u_wide = u.reshape(n, c)
    else:
        # Lane-concatenate the TB batch elements (static, tile-aligned slices:
        # C is a multiple of 128), giving one matmul with a TB*C lane dim.
        u_wide = jnp.concatenate([u[b] for b in range(tb)], axis=-1)  # (N,TB*C)
    tok_wide = jnp.dot(wt_ref[...], u_wide, preferred_element_type=f32)
    if tb == 1:
        tok = tok_wide.reshape(1, n, c)
    else:
        tok = jnp.stack([tok_wide[:, b * c:(b + 1) * c] for b in range(tb)],
                        axis=0)                        # back to (TB, N, C)
    # btb is the token bias pre-broadcast to (N, C): plain VPU add.
    # Overwrite x with the first residual (short live range), flatten to 2-D.
    x = (x + ls1 * (tok + btb_ref[...])).reshape(tb * n, c)

    # ---- channel-MLP branch, hidden dimension tiled --------------------------
    v = (beta2 + alpha2 * x).astype(bf16)              # norm2 (Affine), (TB*N, C)
    mlp = jnp.zeros((tb * n, c), f32)
    for h0 in range(0, hdim, h_chunk):
        hc = min(h_chunk, hdim - h0)
        h = jnp.dot(v, w1t_ref[:, h0:h0 + hc], preferred_element_type=f32)
        h = h + bb1_ref[:, h0:h0 + hc]
        # tanh GELU routes the transcendental to the EUP slot; exact erf is
        # kept behind approximate_gelu=False for PyTorch-parity testing.
        h = jax.nn.gelu(h, approximate=approximate_gelu).astype(bf16)
        mlp = mlp + jnp.dot(h, w2t_ref[h0:h0 + hc, :],
                            preferred_element_type=f32)
    mlp = mlp + b2                                     # fc2 bias, added once
    o_ref[...] = (x + ls2 * mlp).astype(o_ref.dtype).reshape(tb, n, c)


def _pack_params(p):
    """Pack small vectors into one (8, C) slab, pre-broadcast the token bias
    to (N, C), cast matmul weights to bf16.  In a real model this is done once
    at load time, not per forward."""
    f32, bf16 = jnp.float32, jnp.bfloat16
    C = p["alpha1"].shape[-1]
    N = p["wt"].shape[0]
    rows = [p["alpha1"], p["beta1"], p["alpha2"], p["beta2"],
            p["b2"], p["ls1"], p["ls2"]]
    rows = [r.reshape(1, C).astype(f32) for r in rows]
    rows.append(jnp.zeros((1, C), f32))                # pad to 8 sublanes
    return {
        "pvec": jnp.concatenate(rows, axis=0),                       # (8, C)
        "wt": p["wt"].astype(bf16),                                  # (N, N)
        "btb": jnp.broadcast_to(p["bt"].reshape(N, 1), (N, C)).astype(f32),
        "w1t": p["w1t"].astype(bf16),                                # (C, H)
        "bb1": p["b1"].reshape(1, -1).astype(f32),                   # (1, H)
        "w2t": p["w2t"].astype(bf16),                                # (H, C)
    }


def _chip_tuning():
    """Generation-dependent knobs, keyed off the VMEM capacity.

    v7x  (64 MiB VMEM):  ~48 MiB cap, >=4 grid steps (2 steps per TensorCore).
    v5e/v6e (128 MiB):    ~96 MiB cap, larger per-step batch tile.
    Unknown backend:      conservative 48 MiB cap.
    """
    cap = None
    if hasattr(pltpu, "get_tpu_info"):
        try:
            cap = int(getattr(pltpu.get_tpu_info(),
                              "vmem_capacity_bytes", 0)) or None
        except Exception:
            cap = None
    if cap is None:
        return {"vmem_cap": 48 << 20, "target_rows": 256, "min_steps": 2}
    if cap <= (96 << 20):                               # v7x-class (64 MiB)
        return {"vmem_cap": (cap * 3) // 4, "target_rows": 256, "min_steps": 4}
    return {"vmem_cap": min((cap * 3) // 4, 100 << 20),  # v5e/v6e (128 MiB)
            "target_rows": 512, "min_steps": 2}


def _choose_tb(batch, seq_len, *, target_rows=256, min_steps=2):
    """Batch elements per grid step.  Prefer tb*seq_len to be a multiple of
    128 (MXU M alignment, esp. v5e), near target_rows, while keeping at least
    min_steps grid steps so the pipeline (and v7x's two TensorCores) overlap
    DMA with compute."""
    divisors = [d for d in range(1, batch + 1) if batch % d == 0]
    cands = divisors
    for req in (min_steps, 2, 1):
        sel = [d for d in divisors if batch // d >= req]
        if sel:
            cands = sel
            break

    def key(d):
        rows = d * seq_len
        return (0 if rows % 128 == 0 else 1, abs(rows - target_rows), -d)

    return min(cands, key=key)


def _choose_h_chunk(hidden, max_chunk=1024):
    """Chunk the channel-MLP hidden dim so the (TB*N, h_chunk) intermediates
    stay small; chunks are 128-aligned divisors of H when possible."""
    if hidden <= max_chunk:
        return hidden
    if hidden % 128 != 0:
        return hidden
    for cand in range(max_chunk, 127, -128):
        if hidden % cand == 0:
            return cand
    return hidden


def _supports_weight_single_buffering():
    """Narrow feature probe: does this jax build accept BlockSpec(...,
    pipeline_mode=pl.Buffered(1))?  (No kernel compile involved.)"""
    if not hasattr(pl, "Buffered"):
        return False
    try:
        pl.BlockSpec((8, 128), lambda g: (0, 0), pipeline_mode=pl.Buffered(1))
        return True
    except TypeError:
        return False


def _resblock_call(x, packed, *, tb, weight_buffers, vmem_cap, h_chunk,
                   approximate_gelu, out_dtype):
    B, N, C = x.shape
    H = packed["w1t"].shape[1]
    grid = (B // tb,)

    def resident(shape):
        # Constant-index (weight-like) block: fetched once; optionally
        # single-buffered to halve its VMEM footprint (matters on v7x 64 MiB).
        index_map = lambda g: (0,) * len(shape)
        if weight_buffers is None:
            return pl.BlockSpec(shape, index_map)
        return pl.BlockSpec(shape, index_map,
                            pipeline_mode=pl.Buffered(weight_buffers))

    grid_spec = pltpu.PrefetchScalarGridSpec(
        num_scalar_prefetch=0,
        grid=grid,
        in_specs=[
            pl.BlockSpec((tb, N, C), lambda g: (g, 0, 0)),  # x: streamed
            resident((_NUM_VEC_ROWS, C)),                   # packed vectors
            resident((N, N)),                               # token-mix weight
            resident((N, C)),                               # token bias (bcast)
            resident((C, H)),                               # fc1 weight^T
            resident((1, H)),                               # fc1 bias
            resident((H, C)),                               # fc2 weight^T
        ],
        out_specs=pl.BlockSpec((tb, N, C), lambda g: (g, 0, 0)),
    )

    # Advisory cost estimate so XLA schedules around the custom call sensibly.
    flops = 2 * B * (N * N * C + 2 * N * C * H)
    param_bytes = sum(int(v.size) * v.dtype.itemsize for v in packed.values())
    out_itemsize = jnp.dtype(out_dtype).itemsize
    cost = pl.CostEstimate(
        flops=flops,
        transcendentals=B * N * H,                          # GELU
        bytes_accessed=B * N * C * (x.dtype.itemsize + out_itemsize)
                       + param_bytes)

    # Explicit VMEM limit with headroom; capped per chip generation.
    wb = 2 if weight_buffers is None else weight_buffers
    resident_bytes = wb * param_bytes
    streamed_bytes = 2 * tb * N * C * (x.dtype.itemsize + out_itemsize)
    scratch_bytes = (7 * tb * N * C + 3 * tb * N * h_chunk) * 4
    need = resident_bytes + streamed_bytes + scratch_bytes
    vmem_limit = int(min(max(int(1.5 * need), 32 * 1024 * 1024), vmem_cap))

    kernel = partial(resblock_kernel, h_chunk=h_chunk,
                     approximate_gelu=approximate_gelu)
    return pl.pallas_call(
        kernel,
        out_shape=jax.ShapeDtypeStruct((B, N, C), out_dtype),
        grid_spec=grid_spec,
        compiler_params=pltpu.CompilerParams(
            dimension_semantics=("parallel",),
            vmem_limit_bytes=vmem_limit),
        cost_estimate=cost,
    )(x, packed["pvec"], packed["wt"], packed["btb"],
      packed["w1t"], packed["bb1"], packed["w2t"])


def resblock_forward(x, params, *, tb=None, approximate_gelu=True,
                     io_dtype=None):
    """ResBlock forward.  approximate_gelu=True (default perf path) uses tanh
    GELU on the EUP; pass False for exact-erf PyTorch parity.  io_dtype=bf16
    halves the streamed activation bytes (opt-in, for DMA-bound configs)."""
    B, N, C = x.shape
    tune = _chip_tuning()
    if tb is None:
        tb = _choose_tb(B, N, target_rows=tune["target_rows"],
                        min_steps=tune["min_steps"])
    if B % tb != 0:
        raise ValueError(f"batch {B} must be divisible by tb={tb}")
    packed = _pack_params(params)
    h_chunk = _choose_h_chunk(packed["w1t"].shape[1])
    if io_dtype is not None:
        x = x.astype(io_dtype)
    kwargs = dict(tb=tb, vmem_cap=tune["vmem_cap"], h_chunk=h_chunk,
                  approximate_gelu=approximate_gelu, out_dtype=x.dtype)

    use_single = _supports_weight_single_buffering()
    try:
        return _resblock_call(x, packed,
                              weight_buffers=1 if use_single else None,
                              **kwargs)
    except Exception as e:
        # Narrow retry: only when this build parsed pipeline_mode but cannot
        # lower single-buffered (Buffered(1)) weight blocks.  Anything else
        # (real lowering / VMEM-OOM failures) is re-raised untouched.
        msg = str(e)
        if use_single and any(s in msg for s in
                              ("pipeline_mode", "Buffered", "buffer_count")):
            return _resblock_call(x, packed, weight_buffers=None, **kwargs)
        raise


def init_params(key, dim, seq_len, mlp_ratio=4, init_values=1e-4):
    """Synthetic parameters matching ResBlock shapes.  Affine params are
    mildly perturbed from the PyTorch ones/zeros init so the numerical check
    actually exercises them."""
    hidden = int(dim * mlp_ratio)
    k = jax.random.split(key, 10)
    f32 = jnp.float32
    return {
        "alpha1": 1.0 + 0.05 * jax.random.normal(k[0], (1, dim), f32),
        "beta1": 0.05 * jax.random.normal(k[1], (1, dim), f32),
        "alpha2": 1.0 + 0.05 * jax.random.normal(k[2], (1, dim), f32),
        "beta2": 0.05 * jax.random.normal(k[3], (1, dim), f32),
        # linear_tokens: nn.Linear(seq_len, seq_len) -> weight (N, N), bias (N,)
        "wt": 0.02 * jax.random.normal(k[4], (seq_len, seq_len), f32),
        "bt": 0.02 * jax.random.normal(k[5], (seq_len, 1), f32),
        # mlp_channels: fc1 (hidden, dim), fc2 (dim, hidden); stored transposed
        "w1t": 0.02 * jax.random.normal(k[6], (dim, hidden), f32),
        "b1": 0.02 * jax.random.normal(k[7], (1, hidden), f32),
        "w2t": 0.02 * jax.random.normal(k[8], (hidden, dim), f32),
        "b2": 0.02 * jax.random.normal(k[9], (1, dim), f32),
        # LayerScale
        "ls1": jnp.full((1, dim), init_values, f32),
        "ls2": jnp.full((1, dim), init_values, f32),
    }


def resblock_reference(x, p, matmul_dtype=jnp.float32, approximate_gelu=False):
    """Pure-JAX reference mirroring the PyTorch forward.  matmul_dtype=bf16 and
    approximate_gelu=True reproduce the kernel's default numerics recipe."""
    md, f32 = matmul_dtype, jnp.float32
    wt, w1t, w2t = (p["wt"].astype(md), p["w1t"].astype(md), p["w2t"].astype(md))
    u = p["beta1"] + p["alpha1"] * x
    tok = jnp.einsum("nm,bmc->bnc", wt, u.astype(md),
                     preferred_element_type=f32) + p["bt"][None, :, :]
    x = x + p["ls1"] * tok
    v = p["beta2"] + p["alpha2"] * x
    h = jnp.dot(v.astype(md), w1t, preferred_element_type=f32) + p["b1"]
    h = jax.nn.gelu(h, approximate=approximate_gelu)
    mlp = jnp.dot(h.astype(md), w2t, preferred_element_type=f32) + p["b2"]
    return x + p["ls2"] * mlp


if __name__ == "__main__":
    # Small but lane-dense test shapes: C and H are multiples of 128.
    B, N, C, MLP_RATIO = 8, 32, 128, 4          # hidden = 512

    key = jax.random.PRNGKey(0)
    kx, kp = jax.random.split(key)
    x = jax.random.normal(kx, (B, N, C), jnp.float32)
    # init_values bumped from 1e-4 so branch outputs are large enough for the
    # numerical comparison to be meaningful.
    params = init_params(kp, dim=C, seq_len=N, mlp_ratio=MLP_RATIO,
                         init_values=0.5)

    out = jax.block_until_ready(resblock_forward(x, params))
    assert out.shape == (B, N, C) and out.dtype == x.dtype

    # Tight check vs a reference using the same recipe as the kernel's default
    # path (bf16 MXU operands, f32 accumulation, tanh GELU).
    ref_same = resblock_reference(x, params, matmul_dtype=jnp.bfloat16,
                                  approximate_gelu=True)
    assert jnp.allclose(out, ref_same, rtol=2e-3, atol=2e-3), \
        "mismatch vs bf16/tanh-GELU reference"

    # Looser sanity check vs the exact f32, erf-GELU PyTorch-equivalent forward
    # (bf16 MXU operands + tanh GELU introduce ~1e-3-level differences).
    ref_f32 = resblock_reference(x, params, matmul_dtype=jnp.float32,
                                 approximate_gelu=False)
    assert jnp.allclose(out, ref_f32, rtol=3e-2, atol=3e-2), \
        "mismatch vs exact f32 reference"

    print("KERNEL_OK")
</pallas_src>

<mosaic_0001>
module attributes {stable_mosaic.version = 11 : i64} {
  func.func @resblock_kernel(%arg0: i32, %arg1: memref<4x32x128xf32, #tpu.memory_space<vmem>>, %arg2: memref<8x128xf32, #tpu.memory_space<vmem>>, %arg3: memref<32x32xbf16, #tpu.memory_space<vmem>>, %arg4: memref<32x128xf32, #tpu.memory_space<vmem>>, %arg5: memref<128x512xbf16, #tpu.memory_space<vmem>>, %arg6: memref<1x512xf32, #tpu.memory_space<vmem>>, %arg7: memref<512x128xbf16, #tpu.memory_space<vmem>>, %arg8: memref<4x32x128xf32, #tpu.memory_space<vmem>>) attributes {dimension_semantics = [#tpu.dimension_semantics<parallel>], iteration_bounds = array<i64: 2>, scalar_prefetch = 0 : i64, scratch_operands = 0 : i64, tpu.core_type = #tpu.core_type<tc>, window_params = [{transform_indices = @transform_0, window_bounds = array<i64: 4, 32, 128>}, {pipeline_mode = #tpu.pipeline_mode<synchronous>, transform_indices = @transform_1, window_bounds = array<i64: 8, 128>}, {pipeline_mode = #tpu.pipeline_mode<synchronous>, transform_indices = @transform_2, window_bounds = array<i64: 32, 32>}, {pipeline_mode = #tpu.pipeline_mode<synchronous>, transform_indices = @transform_3, window_bounds = array<i64: 32, 128>}, {pipeline_mode = #tpu.pipeline_mode<synchronous>, transform_indices = @transform_4, window_bounds = array<i64: 128, 512>}, {pipeline_mode = #tpu.pipeline_mode<synchronous>, transform_indices = @transform_5, window_bounds = array<i64: 1, 512>}, {pipeline_mode = #tpu.pipeline_mode<synchronous>, transform_indices = @transform_6, window_bounds = array<i64: 512, 128>}, {transform_indices = @transform_7, window_bounds = array<i64: 4, 32, 128>}]} {
    %c0 = arith.constant 0 : index
    %c0_0 = arith.constant 0 : index
    %0 = vector.load %arg2[%c0, %c0_0] : memref<8x128xf32, #tpu.memory_space<vmem>>, vector<8x128xf32>
    %1 = vector.extract_strided_slice %0 {offsets = [0, 0], sizes = [1, 128], strides = [1, 1]} : vector<8x128xf32> to vector<1x128xf32>
    %2 = vector.extract_strided_slice %0 {offsets = [1, 0], sizes = [1, 128], strides = [1, 1]} : vector<8x128xf32> to vector<1x128xf32>
    %3 = vector.extract_strided_slice %0 {offsets = [2, 0], sizes = [1, 128], strides = [1, 1]} : vector<8x128xf32> to vector<1x128xf32>
    %4 = vector.extract_strided_slice %0 {offsets = [3, 0], sizes = [1, 128], strides = [1, 1]} : vector<8x128xf32> to vector<1x128xf32>
    %5 = vector.extract_strided_slice %0 {offsets = [4, 0], sizes = [1, 128], strides = [1, 1]} : vector<8x128xf32> to vector<1x128xf32>
    %6 = vector.extract_strided_slice %0 {offsets = [5, 0], sizes = [1, 128], strides = [1, 1]} : vector<8x128xf32> to vector<1x128xf32>
    %7 = vector.extract_strided_slice %0 {offsets = [6, 0], sizes = [1, 128], strides = [1, 1]} : vector<8x128xf32> to vector<1x128xf32>
    %c0_1 = arith.constant 0 : index
    %c0_2 = arith.constant 0 : index
    %c0_3 = arith.constant 0 : index
    %8 = vector.load %arg1[%c0_1, %c0_2, %c0_3] : memref<4x32x128xf32, #tpu.memory_space<vmem>>, vector<4x32x128xf32>
    %9 = vector.shape_cast %1 : vector<1x128xf32> to vector<1x1x128xf32>
    %10 = vector.broadcast %9 : vector<1x1x128xf32> to vector<4x32x128xf32>
    %11 = arith.mulf %10, %8 : vector<4x32x128xf32>
    %12 = vector.shape_cast %2 : vector<1x128xf32> to vector<1x1x128xf32>
    %13 = vector.broadcast %12 : vector<1x1x128xf32> to vector<4x32x128xf32>
    %14 = arith.addf %13, %11 : vector<4x32x128xf32>
    %15 = arith.truncf %14 : vector<4x32x128xf32> to vector<4x32x128xbf16>
    %16 = vector.extract_strided_slice %15 {offsets = [0, 0, 0], sizes = [1, 32, 128], strides = [1, 1, 1]} : vector<4x32x128xbf16> to vector<1x32x128xbf16>
    %17 = vector.shape_cast %16 : vector<1x32x128xbf16> to vector<32x128xbf16>
    %18 = vector.extract_strided_slice %15 {offsets = [1, 0, 0], sizes = [1, 32, 128], strides = [1, 1, 1]} : vector<4x32x128xbf16> to vector<1x32x128xbf16>
    %19 = vector.shape_cast %18 : vector<1x32x128xbf16> to vector<32x128xbf16>
    %20 = vector.extract_strided_slice %15 {offsets = [2, 0, 0], sizes = [1, 32, 128], strides = [1, 1, 1]} : vector<4x32x128xbf16> to vector<1x32x128xbf16>
    %21 = vector.shape_cast %20 : vector<1x32x128xbf16> to vector<32x128xbf16>
    %22 = vector.extract_strided_slice %15 {offsets = [3, 0, 0], sizes = [1, 32, 128], strides = [1, 1, 1]} : vector<4x32x128xbf16> to vector<1x32x128xbf16>
    %23 = vector.shape_cast %22 : vector<1x32x128xbf16> to vector<32x128xbf16>
    %24 = tpu.concatenate %17, %19, %21, %23 in 1 : vector<32x128xbf16>, vector<32x128xbf16>, vector<32x128xbf16>, vector<32x128xbf16> -> vector<32x512xbf16>
    %c0_4 = arith.constant 0 : index
    %c0_5 = arith.constant 0 : index
    %25 = vector.load %arg3[%c0_4, %c0_5] : memref<32x32xbf16, #tpu.memory_space<vmem>>, vector<32x32xbf16>
    %cst = arith.constant dense<0.000000e+00> : vector<32x512xf32>
    %26 = tpu.matmul %25, %24, %cst {dimension_numbers = #tpu.dot_dimension_numbers<[1], [0], [0], [1], [0, 0, 1, 1], [], []>} : vector<32x32xbf16>, vector<32x512xbf16>, vector<32x512xf32> -> vector<32x512xf32>
    %27 = vector.extract_strided_slice %26 {offsets = [0, 0], sizes = [32, 128], strides = [1, 1]} : vector<32x512xf32> to vector<32x128xf32>
    %28 = vector.extract_strided_slice %26 {offsets = [0, 128], sizes = [32, 128], strides = [1, 1]} : vector<32x512xf32> to vector<32x128xf32>
    %29 = vector.extract_strided_slice %26 {offsets = [0, 256], sizes = [32, 128], strides = [1, 1]} : vector<32x512xf32> to vector<32x128xf32>
    %30 = vector.extract_strided_slice %26 {offsets = [0, 384], sizes = [32, 128], strides = [1, 1]} : vector<32x512xf32> to vector<32x128xf32>
    %31 = vector.shape_cast %27 : vector<32x128xf32> to vector<1x32x128xf32>
    %32 = vector.shape_cast %28 : vector<32x128xf32> to vector<1x32x128xf32>
    %33 = vector.shape_cast %29 : vector<32x128xf32> to vector<1x32x128xf32>
    %34 = vector.shape_cast %30 : vector<32x128xf32> to vector<1x32x128xf32>
    %35 = tpu.concatenate %31, %32, %33, %34 in 0 : vector<1x32x128xf32>, vector<1x32x128xf32>, vector<1x32x128xf32>, vector<1x32x128xf32> -> vector<4x32x128xf32>
    %c0_6 = arith.constant 0 : index
    %c0_7 = arith.constant 0 : index
    %36 = vector.load %arg4[%c0_6, %c0_7] : memref<32x128xf32, #tpu.memory_space<vmem>>, vector<32x128xf32>
    %37 = vector.shape_cast %36 : vector<32x128xf32> to vector<1x32x128xf32>
    %38 = vector.broadcast %37 : vector<1x32x128xf32> to vector<4x32x128xf32>
    %39 = arith.addf %35, %38 : vector<4x32x128xf32>
    %40 = vector.shape_cast %6 : vector<1x128xf32> to vector<1x1x128xf32>
    %41 = vector.broadcast %40 : vector<1x1x128xf32> to vector<4x32x128xf32>
    %42 = arith.mulf %41, %39 : vector<4x32x128xf32>
    %43 = arith.addf %8, %42 : vector<4x32x128xf32>
    %44 = vector.shape_cast %43 : vector<4x32x128xf32> to vector<128x128xf32>
    %45 = vector.broadcast %3 : vector<1x128xf32> to vector<128x128xf32>
    %46 = arith.mulf %45, %44 : vector<128x128xf32>
    %47 = vector.broadcast %4 : vector<1x128xf32> to vector<128x128xf32>
    %48 = arith.addf %47, %46 : vector<128x128xf32>
    %49 = arith.truncf %48 : vector<128x128xf32> to vector<128x128xbf16>
    %cst_8 = arith.constant 0.000000e+00 : f32
    %50 = vector.broadcast %cst_8 : f32 to vector<128x128xf32>
    %c0_9 = arith.constant 0 : index
    %c0_10 = arith.constant 0 : index
    %51 = vector.load %arg5[%c0_9, %c0_10] : memref<128x512xbf16, #tpu.memory_space<vmem>>, vector<128x512xbf16>
    %cst_11 = arith.constant dense<0.000000e+00> : vector<128x512xf32>
    %52 = tpu.matmul %49, %51, %cst_11 {dimension_numbers = #tpu.dot_dimension_numbers<[1], [0], [0], [1], [0, 0, 1, 1], [], []>} : vector<128x128xbf16>, vector<128x512xbf16>, vector<128x512xf32> -> vector<128x512xf32>
    %c0_12 = arith.constant 0 : index
    %c0_13 = arith.constant 0 : index
    %53 = vector.load %arg6[%c0_12, %c0_13] : memref<1x512xf32, #tpu.memory_space<vmem>>, vector<1x512xf32>
    %54 = vector.broadcast %53 : vector<1x512xf32> to vector<128x512xf32>
    %55 = arith.addf %52, %54 : vector<128x512xf32>
    %56 = arith.mulf %55, %55 : vector<128x512xf32>
    %57 = arith.mulf %55, %56 : vector<128x512xf32>
    %cst_14 = arith.constant 4.471500e-02 : f32
    %58 = vector.broadcast %cst_14 : f32 to vector<128x512xf32>
    %59 = arith.mulf %58, %57 : vector<128x512xf32>
    %60 = arith.addf %55, %59 : vector<128x512xf32>
    %cst_15 = arith.constant 0.797884583 : f32
    %61 = vector.broadcast %cst_15 : f32 to vector<128x512xf32>
    %62 = arith.mulf %61, %60 : vector<128x512xf32>
    %63 = math.tanh %62 : vector<128x512xf32>
    %cst_16 = arith.constant 1.000000e+00 : f32
    %64 = vector.broadcast %cst_16 : f32 to vector<128x512xf32>
    %65 = arith.addf %64, %63 : vector<128x512xf32>
    %cst_17 = arith.constant 5.000000e-01 : f32
    %66 = vector.broadcast %cst_17 : f32 to vector<128x512xf32>
    %67 = arith.mulf %66, %65 : vector<128x512xf32>
    %68 = arith.mulf %55, %67 : vector<128x512xf32>
    %69 = arith.truncf %68 : vector<128x512xf32> to vector<128x512xbf16>
    %c0_18 = arith.constant 0 : index
    %c0_19 = arith.constant 0 : index
    %70 = vector.load %arg7[%c0_18, %c0_19] : memref<512x128xbf16, #tpu.memory_space<vmem>>, vector<512x128xbf16>
    %cst_20 = arith.constant dense<0.000000e+00> : vector<128x128xf32>
    %71 = tpu.matmul %69, %70, %cst_20 {dimension_numbers = #tpu.dot_dimension_numbers<[1], [0], [0], [1], [0, 0, 1, 1], [], []>} : vector<128x512xbf16>, vector<512x128xbf16>, vector<128x128xf32> -> vector<128x128xf32>
    %72 = arith.addf %50, %71 : vector<128x128xf32>
    %73 = vector.broadcast %5 : vector<1x128xf32> to vector<128x128xf32>
    %74 = arith.addf %72, %73 : vector<128x128xf32>
    %75 = vector.broadcast %7 : vector<1x128xf32> to vector<128x128xf32>
    %76 = arith.mulf %75, %74 : vector<128x128xf32>
    %77 = arith.addf %44, %76 : vector<128x128xf32>
    %78 = vector.shape_cast %77 : vector<128x128xf32> to vector<4x32x128xf32>
    %c0_21 = arith.constant 0 : index
    %c0_22 = arith.constant 0 : index
    %c0_23 = arith.constant 0 : index
    %79 = vector.load %arg8[%c0_21, %c0_22, %c0_23] : memref<4x32x128xf32, #tpu.memory_space<vmem>>, vector<4x32x128xf32>
    tpu.vector_store %arg8[%c0_21, %c0_22, %c0_23], %78 {strides = array<i32>} : memref<4x32x128xf32, #tpu.memory_space<vmem>>, vector<4x32x128xf32>,
    return
  }
  func.func @transform_0(%arg0: i32) -> (i32, i32, i32) {
    %c0_i32 = arith.constant 0 : i32
    %c0_i32_0 = arith.constant 0 : i32
    %c0_i32_1 = arith.constant 0 : i32
    return %arg0, %c0_i32, %c0_i32_0 : i32, i32, i32
  }
  func.func @transform_1(%arg0: i32) -> (i32, i32) {
    %c0_i32 = arith.constant 0 : i32
    %c0_i32_0 = arith.constant 0 : i32
    %c0_i32_1 = arith.constant 0 : i32
    return %c0_i32, %c0_i32_0 : i32, i32
  }
  func.func @transform_2(%arg0: i32) -> (i32, i32) {
    %c0_i32 = arith.constant 0 : i32
    %c0_i32_0 = arith.constant 0 : i32
    %c0_i32_1 = arith.constant 0 : i32
    return %c0_i32, %c0_i32_0 : i32, i32
  }
  func.func @transform_3(%arg0: i32) -> (i32, i32) {
    %c0_i32 = arith.constant 0 : i32
    %c0_i32_0 = arith.constant 0 : i32
    %c0_i32_1 = arith.constant 0 : i32
    return %c0_i32, %c0_i32_0 : i32, i32
  }
  func.func @transform_4(%arg0: i32) -> (i32, i32) {
    %c0_i32 = arith.constant 0 : i32
    %c0_i32_0 = arith.constant 0 : i32
    %c0_i32_1 = arith.constant 0 : i32
    return %c0_i32, %c0_i32_0 : i32, i32
  }
  func.func @transform_5(%arg0: i32) -> (i32, i32) {
    %c0_i32 = arith.constant 0 : i32
    %c0_i32_0 = arith.constant 0 : i32
    %c0_i32_1 = arith.constant 0 : i32
    return %c0_i32, %c0_i32_0 : i32, i32
  }
  func.func @transform_6(%arg0: i32) -> (i32, i32) {
    %c0_i32 = arith.constant 0 : i32
    %c0_i32_0 = arith.constant 0 : i32
    %c0_i32_1 = arith.constant 0 : i32
    return %c0_i32, %c0_i32_0 : i32, i32
  }
  func.func @transform_7(%arg0: i32) -> (i32, i32, i32) {
    %c0_i32 = arith.constant 0 : i32
    %c0_i32_0 = arith.constant 0 : i32
    %c0_i32_1 = arith.constant 0 : i32
    return %arg0, %c0_i32, %c0_i32_0 : i32, i32, i32
  }
}

</mosaic_0001>

<llo_original>
// kernel: tpu_custom_call.1
$region0: #{tpu_custom_call.1}
  #allocation0 [shape = 'u32[]', space=smem, size = 0x4, offset = 0x4, fixed_abs, tag = 'smem constant byte address 0x4 - core index']
  #allocation1 [shape = 'u32[72,128]{1,0:T(1,128)}', space=vmem, size = 0x9000, scoped, tag = 'internal scratch']
  %s0 = inlined_call_operand.hbm [shape: f32[8,32,128], index: 0, kind: input, shape index: {}]
  %s1 = inlined_call_operand.hbm [shape: f32[8,128], index: 1, kind: input, shape index: {}]
  %s2 = inlined_call_operand.hbm [shape: bf16[32,32], index: 2, kind: input, shape index: {}]
  %s3 = inlined_call_operand.hbm [shape: f32[32,128], index: 3, kind: input, shape index: {}]
  %s4 = inlined_call_operand.hbm [shape: bf16[128,512], index: 4, kind: input, shape index: {}]
  %s5 = inlined_call_operand.vmem [shape: f32[1,512], index: 5, kind: input, shape index: {}]
  %s6 = inlined_call_operand.hbm [shape: bf16[512,128], index: 6, kind: input, shape index: {}]
  %s7 = inlined_call_operand.hbm [shape: f32[8,32,128], index: 7, kind: output, shape index: {}]
  %s8 = sld [smem:[#allocation0]]
  $region85: #{tpu_custom_call.1} parent=0
    _
  %s10 = ssub.s32 1, %s8
  %s11 = scalar_select 0, %s10, %s8
  $region1: #{tpu_custom_call.1} parent=0
    #allocation2 [shape = 'u8[131072]{0}', space=vmem, size = 0x20000, scoped, tag = 'input window, operand 0']
    #allocation3 [shape = 's32[2]{0}', space=sflag, size = 0x8, scoped, tag = 'scoped memory for tpu_custom_call.1']
    #allocation4 [shape = 's32[2]{0}', space=sflag, size = 0x8, scoped, tag = 'scoped memory for tpu_custom_call.1']
    #allocation5 [shape = 'u8[4096]{0}', space=vmem, size = 0x1000, scoped, tag = 'input window, operand 1, single buffered']
    #allocation6 [shape = 's32[1]{0}', space=sflag, size = 0x4, scoped, tag = 'scoped memory for tpu_custom_call.1']
    #allocation7 [shape = 'u8[8192]{0}', space=vmem, size = 0x2000, scoped, tag = 'input window, operand 2, single buffered']
    #allocation8 [shape = 'u8[16384]{0}', space=vmem, size = 0x4000, scoped, tag = 'input window, operand 3, single buffered']
    #allocation9 [shape = 's32[1]{0}', space=sflag, size = 0x4, scoped, tag = 'scoped memory for tpu_custom_call.1']
    #allocation10 [shape = 'u8[131072]{0}', space=vmem, size = 0x20000, scoped, tag = 'input window, operand 4, single buffered']
    #allocation11 [shape = 'u8[131072]{0}', space=vmem, size = 0x20000, scoped, tag = 'input window, operand 6, single buffered']
    #allocation12 [shape = 's32[1]{0}', space=sflag, size = 0x4, scoped, tag = 'scoped memory for tpu_custom_call.1']
    #allocation13 [shape = 'u8[131072]{0}', space=vmem, size = 0x20000, scoped, tag = 'output window, operand 0']
    %12 = vsyncpa [#allocation3], 0
    %s13 = scalar_lea.sflag [#allocation3], 1
    %14 = vsyncpa %s13, 0
    %15 = vsyncpa [#allocation6], 0
    %16 = vsyncpa [#allocation9], 0
    %17 = vsyncpa [#allocation12], 0
    %18 = vsyncpa [#allocation4], 0
    %s19 = scalar_lea.sflag [#allocation4], 1
    %20 = vsyncpa %s19, 0
    loop: start=0, step=1, limit=4
    $region2: #{tpu_custom_call.1} parent=1 // loop_pre_header
      _
    $region3: #{tpu_custom_call.1} parent=1 // loop_header
      %s22 = sphi 0, %s26
      %p23 = scmp.ge.s32.totalorder %s22, 4
      %s32 = sphi 0, %s34
      %s35 = sphi 0, %s32
      %s36 = sphi 0, %s35
      %s52 = sphi 0, %s36
      %s56 = sphi 0, %s56
      %s58 = sphi 0, %s56
      %s59 = sphi 0, %s58
      %s73 = sphi 0, %s59
      %s77 = sphi 0, %s77
      %s79 = sphi 0, %s77
      %s80 = sphi 0, %s79
      %s94 = sphi 0, %s80
      %s98 = sphi 0, %s98
      %s100 = sphi 0, %s98
      %s101 = sphi 0, %s100
      %s115 = sphi 0, %s101
      %s119 = sphi 0, %s119
      %s121 = sphi 0, %s119
      %s122 = sphi 0, %s121
      %s136 = sphi 0, %s122
      %s140 = sphi 0, %s140
      %s142 = sphi 0, %s140
      %s143 = sphi 0, %s142
      %s157 = sphi 0, %s143
      %s161 = sphi 0, %s161
      %s163 = sphi 0, %s161
      %s164 = sphi 0, %s163
      %s178 = sphi 0, %s164
      %s184 = sphi 0, %s186
      %s187 = sphi 0, %s184
      %s188 = sphi 0, %s187
      %s204 = sphi 0, %s188
    $region4: #{tpu_custom_call.1} parent=1 // loop_header_branch
      %25 = sbr.rel (%p23) target = $region8
    $region5: #{tpu_custom_call.1} parent=1 // loop_body
      %s27 = ssub.s32 %s22, 1
      %s28 = ssub.s32 %s22, 2
      %s29 = sadd.s32 %s22, 1
      %s30 = ssub.s32 %s22, %s29
      %p31 = scmp.eq.s32.totalorder %s30, 0
      %s33 = sadd.s32 %s32, 1
      %s34 = scalar_select %p31, %s32, %s33
      %p37 = pneg %p31
      %p38 = scmp.eq.s32.totalorder %s22, 1
      %p39 = por %p37, %p38
      %p40 = scmp.ne.s32.totalorder %s32, %s35
      %p41 = scmp.eq.s32.totalorder %s22, 0
      %p42 = por %p40, %p41
      %p43 = scmp.ne.s32.totalorder %s32, %s35
      %p44 = scmp.eq.s32.totalorder %s27, 1
      %p45 = por %p43, %p44
      %p46 = scmp.ne.s32.totalorder %s35, %s36
      %p47 = scmp.eq.s32.totalorder %s27, 0
      %p48 = por %p46, %p47
      %p49 = scmp.ne.s32.totalorder %s35, %s36
      %p50 = scmp.eq.s32.totalorder %s28, 1
      %p51 = por %p49, %p50
      %p53 = scmp.ne.s32.totalorder %s36, %s52
      %p54 = scmp.eq.s32.totalorder %s28, 0
      %p55 = por %p53, %p54
      %s57 = sadd.s32 %s56, 1
      %p60 = scmp.eq.s32.totalorder %s22, 1
      %p61 = scmp.ne.s32.totalorder %s56, %s58
      %p62 = scmp.eq.s32.totalorder %s22, 0
      %p63 = por %p61, %p62
      %p64 = scmp.ne.s32.totalorder %s56, %s58
      %p65 = scmp.eq.s32.totalorder %s27, 1
      %p66 = por %p64, %p65
      %p67 = scmp.ne.s32.totalorder %s58, %s59
      %p68 = scmp.eq.s32.totalorder %s27, 0
      %p69 = por %p67, %p68
      %p70 = scmp.ne.s32.totalorder %s58, %s59
      %p71 = scmp.eq.s32.totalorder %s28, 1
      %p72 = por %p70, %p71
      %p74 = scmp.ne.s32.totalorder %s59, %s73
      %p75 = scmp.eq.s32.totalorder %s28, 0
      %p76 = por %p74, %p75
      %s78 = sadd.s32 %s77, 1
      %p81 = scmp.eq.s32.totalorder %s22, 1
      %p82 = scmp.ne.s32.totalorder %s77, %s79
      %p83 = scmp.eq.s32.totalorder %s22, 0
      %p84 = por %p82, %p83
      %p85 = scmp.ne.s32.totalorder %s77, %s79
      %p86 = scmp.eq.s32.totalorder %s27, 1
      %p87 = por %p85, %p86
      %p88 = scmp.ne.s32.totalorder %s79, %s80
      %p89 = scmp.eq.s32.totalorder %s27, 0
      %p90 = por %p88, %p89
      %p91 = scmp.ne.s32.totalorder %s79, %s80
      %p92 = scmp.eq.s32.totalorder %s28, 1
      %p93 = por %p91, %p92
      %p95 = scmp.ne.s32.totalorder %s80, %s94
      %p96 = scmp.eq.s32.totalorder %s28, 0
      %p97 = por %p95, %p96
      %s99 = sadd.s32 %s98, 1
      %p102 = scmp.eq.s32.totalorder %s22, 1
      %p103 = scmp.ne.s32.totalorder %s98, %s100
      %p104 = scmp.eq.s32.totalorder %s22, 0
      %p105 = por %p103, %p104
      %p106 = scmp.ne.s32.totalorder %s98, %s100
      %p107 = scmp.eq.s32.totalorder %s27, 1
      %p108 = por %p106, %p107
      %p109 = scmp.ne.s32.totalorder %s100, %s101
      %p110 = scmp.eq.s32.totalorder %s27, 0
      %p111 = por %p109, %p110
      %p112 = scmp.ne.s32.totalorder %s100, %s101
      %p113 = scmp.eq.s32.totalorder %s28, 1
      %p114 = por %p112, %p113
      %p116 = scmp.ne.s32.totalorder %s101, %s115
      %p117 = scmp.eq.s32.totalorder %s28, 0
      %p118 = por %p116, %p117
      %s120 = sadd.s32 %s119, 1
      %p123 = scmp.eq.s32.totalorder %s22, 1
      %p124 = scmp.ne.s32.totalorder %s119, %s121
      %p125 = scmp.eq.s32.totalorder %s22, 0
      %p126 = por %p124, %p125
      %p127 = scmp.ne.s32.totalorder %s119, %s121
      %p128 = scmp.eq.s32.totalorder %s27, 1
      %p129 = por %p127, %p128
      %p130 = scmp.ne.s32.totalorder %s121, %s122
      %p131 = scmp.eq.s32.totalorder %s27, 0
      %p132 = por %p130, %p131
      %p133 = scmp.ne.s32.totalorder %s121, %s122
      %p134 = scmp.eq.s32.totalorder %s28, 1
      %p135 = por %p133, %p134
      %p137 = scmp.ne.s32.totalorder %s122, %s136
      %p138 = scmp.eq.s32.totalorder %s28, 0
      %p139 = por %p137, %p138
      %s141 = sadd.s32 %s140, 1
      %p144 = scmp.eq.s32.totalorder %s22, 1
      %p145 = scmp.ne.s32.totalorder %s140, %s142
      %p146 = scmp.eq.s32.totalorder %s22, 0
      %p147 = por %p145, %p146
      %p148 = scmp.ne.s32.totalorder %s140, %s142
      %p149 = scmp.eq.s32.totalorder %s27, 1
      %p150 = por %p148, %p149
      %p151 = scmp.ne.s32.totalorder %s142, %s143
      %p152 = scmp.eq.s32.totalorder %s27, 0
      %p153 = por %p151, %p152
      %p154 = scmp.ne.s32.totalorder %s142, %s143
      %p155 = scmp.eq.s32.totalorder %s28, 1
      %p156 = por %p154, %p155
      %p158 = scmp.ne.s32.totalorder %s143, %s157
      %p159 = scmp.eq.s32.totalorder %s28, 0
      %p160 = por %p158, %p159
      %s162 = sadd.s32 %s161, 1
      %p165 = scmp.eq.s32.totalorder %s22, 1
      %p166 = scmp.ne.s32.totalorder %s161, %s163
      %p167 = scmp.eq.s32.totalorder %s22, 0
      %p168 = por %p166, %p167
      %p169 = scmp.ne.s32.totalorder %s161, %s163
      %p170 = scmp.eq.s32.totalorder %s27, 1
      %p171 = por %p169, %p170
      %p172 = scmp.ne.s32.totalorder %s163, %s164
      %p173 = scmp.eq.s32.totalorder %s27, 0
      %p174 = por %p172, %p173
      %p175 = scmp.ne.s32.totalorder %s163, %s164
      %p176 = scmp.eq.s32.totalorder %s28, 1
      %p177 = por %p175, %p176
      %p179 = scmp.ne.s32.totalorder %s164, %s178
      %p180 = scmp.eq.s32.totalorder %s28, 0
      %p181 = por %p179, %p180
      %s182 = ssub.s32 %s22, %s29
      %p183 = scmp.eq.s32.totalorder %s182, 0
      %s185 = sadd.s32 %s184, 1
      %s186 = scalar_select %p183, %s184, %s185
      %p189 = pneg %p183
      %p190 = scmp.eq.s32.totalorder %s22, 1
      %p191 = por %p189, %p190
      %p192 = scmp.ne.s32.totalorder %s184, %s187
      %p193 = scmp.eq.s32.totalorder %s22, 0
      %p194 = por %p192, %p193
      %p195 = scmp.ne.s32.totalorder %s184, %s187
      %p196 = scmp.eq.s32.totalorder %s27, 1
      %p197 = por %p195, %p196
      %p198 = scmp.ne.s32.totalorder %s187, %s188
      %p199 = scmp.eq.s32.totalorder %s27, 0
      %p200 = por %p198, %p199
      %p201 = scmp.ne.s32.totalorder %s187, %s188
      %p202 = scmp.eq.s32.totalorder %s28, 1
      %p203 = por %p201, %p202
      %p205 = scmp.ne.s32.totalorder %s188, %s204
      %p206 = scmp.eq.s32.totalorder %s28, 0
      %p207 = por %p205, %p206
      %p208 = scmp.le.s32.totalorder 1, %s22
      %p209 = scmp.lt.s32.totalorder %s22, 3
      %p210 = pnand %p208, %p209
      %p211 = pneg %p210
      // Predicated region
      $region9: #{tpu_custom_call.1} parent=5 // pred_check
        _
      $region10: #{tpu_custom_call.1} parent=5 // pred_check_branch
        %213 = sbr.rel (%p210) target = $region12
      $region11: #{tpu_custom_call.1} parent=5 // pred_region
        %s214 = ssub.s32 %s22, 1
        // Predicated region
        $region13: #{tpu_custom_call.1} parent=11 // pred_check
          %p215 = pneg %p69
        $region14: #{tpu_custom_call.1} parent=11 // pred_check_branch
          %217 = sbr.rel (%p215) target = $region16
        $region15: #{tpu_custom_call.1} parent=11 // pred_region
          %219 = vsyncadd [#allocation6], 0
          %s221 = sshll.u32 %s1, 4
          %s222 = int_to_ptr.hbm [resolvable:$true] %s221
          %s223 = sshll.u32 [#allocation5], 4
          %s224 = int_to_ptr.vmem [resolvable:$true] %s223
          %226 = dma.hbm_to_vmem [thread:$0]  %s222, 128, %s224, [#allocation6]
        $region16: #{tpu_custom_call.1} parent=11 // pred_fallthru
          _
        // Predicated region
        $region17: #{tpu_custom_call.1} parent=11 // pred_check
          %p227 = pneg %p90
        $region18: #{tpu_custom_call.1} parent=11 // pred_check_branch
          %229 = sbr.rel (%p227) target = $region20
        $region19: #{tpu_custom_call.1} parent=11 // pred_region
          %231 = vsyncadd [#allocation6], 0
          %s232 = sshll.u32 %s2, 4
          %s233 = int_to_ptr.hbm [resolvable:$true] %s232
          %s234 = sshll.u32 [#allocation7], 4
          %s235 = int_to_ptr.vmem [resolvable:$true] %s234
          %240 = dma.hbm_to_vmem [thread:$0]  %s233, 256, %s235, [#allocation6], 64, 64, 4
        $region20: #{tpu_custom_call.1} parent=11 // pred_fallthru
          _
        // Predicated region
        $region21: #{tpu_custom_call.1} parent=11 // pred_check
          %p241 = pneg %p111
        $region22: #{tpu_custom_call.1} parent=11 // pred_check_branch
          %243 = sbr.rel (%p241) target = $region24
        $region23: #{tpu_custom_call.1} parent=11 // pred_region
          %245 = vsyncadd [#allocation9], 0
          %s246 = sshll.u32 %s3, 4
          %s247 = int_to_ptr.hbm [resolvable:$true] %s246
          %s248 = sshll.u32 [#allocation8], 4
          %s249 = int_to_ptr.vmem [resolvable:$true] %s248
          %254 = dma.hbm_to_vmem [thread:$0]  %s247, 512, %s249, [#allocation9], 128, 128, 8
        $region24: #{tpu_custom_call.1} parent=11 // pred_fallthru
          _
        // Predicated region
        $region25: #{tpu_custom_call.1} parent=11 // pred_check
          %p255 = pneg %p132
        $region26: #{tpu_custom_call.1} parent=11 // pred_check_branch
          %257 = sbr.rel (%p255) target = $region28
        $region27: #{tpu_custom_call.1} parent=11 // pred_region
          %259 = vsyncadd [#allocation9], 0
          %s260 = sshll.u32 %s4, 4
          %s261 = int_to_ptr.hbm [resolvable:$true] %s260
          %s262 = sshll.u32 [#allocation10], 4
          %s263 = int_to_ptr.vmem [resolvable:$true] %s262
          %268 = dma.hbm_to_vmem [thread:$0]  %s261, 4096, %s263, [#allocation9], 256, 256, 16
        $region28: #{tpu_custom_call.1} parent=11 // pred_fallthru
          _
        // Predicated region
        $region29: #{tpu_custom_call.1} parent=11 // pred_check
          %p269 = pneg %p153
        $region30: #{tpu_custom_call.1} parent=11 // pred_check_branch
          %271 = sbr.rel (%p269) target = $region32
        $region31: #{tpu_custom_call.1} parent=11 // pred_region
          _
        $region32: #{tpu_custom_call.1} parent=11 // pred_fallthru
          _
        // Predicated region
        $region33: #{tpu_custom_call.1} parent=11 // pred_check
          %p272 = pneg %p174
        $region34: #{tpu_custom_call.1} parent=11 // pred_check_branch
          %274 = sbr.rel (%p272) target = $region36
        $region35: #{tpu_custom_call.1} parent=11 // pred_region
          %276 = vsyncadd [#allocation12], 0
          %s277 = sshll.u32 %s6, 4
          %s278 = int_to_ptr.hbm [resolvable:$true] %s277
          %s279 = sshll.u32 [#allocation11], 4
          %s280 = int_to_ptr.vmem [resolvable:$true] %s279
          %285 = dma.hbm_to_vmem [thread:$0]  %s278, 4096, %s280, [#allocation12], 64, 64, 4
        $region36: #{tpu_custom_call.1} parent=11 // pred_fallthru
          _
      $region12: #{tpu_custom_call.1} parent=5 // pred_fallthru
        _
      %p286 = scmp.lt.s32.totalorder %s22, 2
      // Predicated region
      $region37: #{tpu_custom_call.1} parent=5 // pred_check
        %p287 = pneg %p286
      $region38: #{tpu_custom_call.1} parent=5 // pred_check_branch
        %289 = sbr.rel (%p287) target = $region40
      $region39: #{tpu_custom_call.1} parent=5 // pred_region
        // Predicated region
        $region41: #{tpu_custom_call.1} parent=39 // pred_check
          %p290 = pneg %p42
        $region42: #{tpu_custom_call.1} parent=39 // pred_check_branch
          %292 = sbr.rel (%p290) target = $region44
        $region43: #{tpu_custom_call.1} parent=39 // pred_region
          %s293 = sand.u32 %s32, 1
          %s294 = scalar_lea.sflag [#allocation3], %s293
          %s295 = sand.u32 %s32, 1
          %s296 = smul.addr %s295, 128
          %s297 = scalar_lea.vmem [#allocation2], %s296
          %s298 = smul.u32 4, %s22
          %300 = vsyncadd %s294, 0
          %s301 = smul.addr %s298, 4
          %s302 = smul.addr %s301, 8
          %s303 = scalar_lea.hbm %s0, %s302
          %s304 = sshll.u32 %s303, 4
          %s305 = int_to_ptr.hbm [resolvable:$true] %s304
          %s306 = sshll.u32 %s297, 4
          %s307 = int_to_ptr.vmem [resolvable:$true] %s306
          %312 = dma.hbm_to_vmem [thread:$0]  %s305, 2048, %s307, %s294, 128, 128, 8
        $region44: #{tpu_custom_call.1} parent=39 // pred_fallthru
          _
      $region40: #{tpu_custom_call.1} parent=5 // pred_fallthru
        _
      %p313 = scmp.le.s32.totalorder 1, %s22
      %p314 = scmp.lt.s32.totalorder %s22, 3
      %p315 = pnand %p313, %p314
      %p316 = pneg %p315
      // Predicated region
      $region45: #{tpu_custom_call.1} parent=5 // pred_check
        _
      $region46: #{tpu_custom_call.1} parent=5 // pred_check_branch
        %318 = sbr.rel (%p315) target = $region48
      $region47: #{tpu_custom_call.1} parent=5 // pred_region
        %s319 = ssub.s32 %s22, 1
        %s320 = sand.u32 %s35, 1
        %s321 = scalar_lea.sflag [#allocation3], %s320
        %s322 = sand.u32 %s35, 1
        %s323 = smul.addr %s322, 128
        %s324 = scalar_lea.vmem [#allocation2], %s323
        // Predicated region
        $region49: #{tpu_custom_call.1} parent=47 // pred_check
          %p325 = pneg %p48
        $region50: #{tpu_custom_call.1} parent=47 // pred_check_branch
          %327 = sbr.rel (%p325) target = $region52
        $region51: #{tpu_custom_call.1} parent=47 // pred_region
          %329 = dma.done %s321, 2048
        $region52: #{tpu_custom_call.1} parent=47 // pred_fallthru
          _
        // Predicated region
        $region53: #{tpu_custom_call.1} parent=47 // pred_check
          %p330 = pneg %p69
        $region54: #{tpu_custom_call.1} parent=47 // pred_check_branch
          %332 = sbr.rel (%p330) target = $region56
        $region55: #{tpu_custom_call.1} parent=47 // pred_region
          %334 = dma.done [#allocation6], 128
        $region56: #{tpu_custom_call.1} parent=47 // pred_fallthru
          _
        // Predicated region
        $region57: #{tpu_custom_call.1} parent=47 // pred_check
          %p335 = pneg %p90
        $region58: #{tpu_custom_call.1} parent=47 // pred_check_branch
          %337 = sbr.rel (%p335) target = $region60
        $region59: #{tpu_custom_call.1} parent=47 // pred_region
          %339 = dma.done [#allocation6], 256
        $region60: #{tpu_custom_call.1} parent=47 // pred_fallthru
          _
        // Predicated region
        $region61: #{tpu_custom_call.1} parent=47 // pred_check
          %p340 = pneg %p111
        $region62: #{tpu_custom_call.1} parent=47 // pred_check_branch
          %342 = sbr.rel (%p340) target = $region64
        $region63: #{tpu_custom_call.1} parent=47 // pred_region
          %344 = dma.done [#allocation9], 512
        $region64: #{tpu_custom_call.1} parent=47 // pred_fallthru
          _
        // Predicated region
        $region65: #{tpu_custom_call.1} parent=47 // pred_check
          %p345 = pneg %p132
        $region66: #{tpu_custom_call.1} parent=47 // pred_check_branch
          %347 = sbr.rel (%p345) target = $region68
        $region67: #{tpu_custom_call.1} parent=47 // pred_region
          %349 = dma.done [#allocation9], 4096
        $region68: #{tpu_custom_call.1} parent=47 // pred_fallthru
          _
        // Predicated region
        $region69: #{tpu_custom_call.1} parent=47 // pred_check
          %p350 = pneg %p174
        $region70: #{tpu_custom_call.1} parent=47 // pred_check_branch
          %352 = sbr.rel (%p350) target = $region72
        $region71: #{tpu_custom_call.1} parent=47 // pred_region
          %354 = dma.done [#allocation12], 4096
        $region72: #{tpu_custom_call.1} parent=47 // pred_fallthru
          _
        %s355 = sand.u32 %s35, 1
        %s356 = scalar_lea.sflag [#allocation3], %s355
        %s357 = sand.u32 %s35, 1
        %s358 = smul.addr %s357, 128
        %s359 = scalar_lea.vmem [#allocation2], %s358
        %p360 = pneg %p48
        %p361 = pneg %p45
        %p362 = pneg %p69
        %p363 = pneg %p66
        %p364 = pneg %p90
        %p365 = pneg %p87
        %p366 = pneg %p111
        %p367 = pneg %p108
        %p368 = pneg %p132
        %p369 = pneg %p129
        %p370 = pneg %p153
        %p371 = pneg %p150
        %p372 = pneg %p174
        %p373 = pneg %p171
        %p374 = pneg %p200
        %p375 = pneg %p197
        %s376 = sand.u32 %s187, 1
        %s377 = scalar_lea.sflag [#allocation4], %s376
        %s378 = sand.u32 %s187, 1
        %s379 = smul.addr %s378, 128
        %s380 = scalar_lea.vmem [#allocation13], %s379
        %s381 = smul.u32 4, %s27
        %s382 = smul.u32 4, %s27
        %v384 = vld [vmem:[#allocation5] sm:$0xff]
        %v385 = vld [vmem:[%s324] sm:$0xff]
        %v386 = vld [vmem:[%s324 + $0x8] sm:$0xff]
        %v387 = vld [vmem:[%s324 + $0x10] sm:$0xff]
        %v388 = vld [vmem:[%s324 + $0x18] sm:$0xff]
        %v389 = vld [vmem:[%s324 + $0x20] sm:$0xff]
        %v390 = vld [vmem:[%s324 + $0x28] sm:$0xff]
        %v391 = vld [vmem:[%s324 + $0x30] sm:$0xff]
        %v392 = vld [vmem:[%s324 + $0x38] sm:$0xff]
        %v393 = vld [vmem:[%s324 + $0x40] sm:$0xff]
        %v394 = vld [vmem:[%s324 + $0x48] sm:$0xff]
        %v395 = vld [vmem:[%s324 + $0x50] sm:$0xff]
        %v396 = vld [vmem:[%s324 + $0x58] sm:$0xff]
        %v397 = vld [vmem:[%s324 + $0x60] sm:$0xff]
        %v398 = vld [vmem:[%s324 + $0x68] sm:$0xff]
        %v399 = vld [vmem:[%s324 + $0x70] sm:$0xff]
        %v400 = vld [vmem:[%s324 + $0x78] sm:$0xff]
        %v401 = vperm.slane %v384, 0
        %v402 = vmul.f32 %v401, %v385
        %v403 = vmul.f32 %v401, %v386
        %v404 = vmul.f32 %v401, %v387
        %v405 = vmul.f32 %v401, %v388
        %v406 = vmul.f32 %v401, %v389
        %v407 = vmul.f32 %v401, %v390
        %v408 = vmul.f32 %v401, %v391
        %v409 = vmul.f32 %v401, %v392
        %v410 = vmul.f32 %v401, %v393
        %v411 = vmul.f32 %v401, %v394
        %v412 = vmul.f32 %v401, %v395
        %v413 = vmul.f32 %v401, %v396
        %v414 = vmul.f32 %v401, %v397
        %v415 = vmul.f32 %v401, %v398
        %v416 = vmul.f32 %v401, %v399
        %v417 = vmul.f32 %v401, %v400
        %v418 = vperm.slane %v384, 1
        %v419 = vadd.f32 %v418, %v402
        %v420 = vadd.f32 %v418, %v403
        %v421 = vadd.f32 %v418, %v404
        %v422 = vadd.f32 %v418, %v405
        %v423 = vadd.f32 %v418, %v406
        %v424 = vadd.f32 %v418, %v407
        %v425 = vadd.f32 %v418, %v408
        %v426 = vadd.f32 %v418, %v409
        %v427 = vadd.f32 %v418, %v410
        %v428 = vadd.f32 %v418, %v411
        %v429 = vadd.f32 %v418, %v412
        %v430 = vadd.f32 %v418, %v413
        %v431 = vadd.f32 %v418, %v414
        %v432 = vadd.f32 %v418, %v415
        %v433 = vadd.f32 %v418, %v416
        %v434 = vadd.f32 %v418, %v417
        %v435 = vpack.c.bf16 %v419, %v419
        %v436 = vpack.c.bf16 %v420, %v420
        %v437 = vpack.c.bf16 %v421, %v421
        %v438 = vpack.c.bf16 %v422, %v422
        %v439 = vpack.c.bf16 %v423, %v423
        %v440 = vpack.c.bf16 %v424, %v424
        %v441 = vpack.c.bf16 %v425, %v425
        %v442 = vpack.c.bf16 %v426, %v426
        %v443 = vpack.c.bf16 %v427, %v427
        %v444 = vpack.c.bf16 %v428, %v428
        %v445 = vpack.c.bf16 %v429, %v429
        %v446 = vpack.c.bf16 %v430, %v430
        %v447 = vpack.c.bf16 %v431, %v431
        %v448 = vpack.c.bf16 %v432, %v432
        %v449 = vpack.c.bf16 %v433, %v433
        %v450 = vpack.c.bf16 %v434, %v434
        %v455 = vunpack.c.l.b16 %v435
        %v456 = vunpack.c.l.b16 %v436
        %v457 = vunpack.c.l.b16 %v437
        %v458 = vunpack.c.l.b16 %v438
        %v459 = vpack.c.b16 %v456, %v455
        %v460 = vpack.c.b16 %v458, %v457
        %v467 = vunpack.c.l.b16 %v439
        %v468 = vunpack.c.l.b16 %v440
        %v469 = vunpack.c.l.b16 %v441
        %v470 = vunpack.c.l.b16 %v442
        %v471 = vpack.c.b16 %v468, %v467
        %v472 = vpack.c.b16 %v470, %v469
        %v479 = vunpack.c.l.b16 %v443
        %v480 = vunpack.c.l.b16 %v444
        %v481 = vunpack.c.l.b16 %v445
        %v482 = vunpack.c.l.b16 %v446
        %v483 = vpack.c.b16 %v480, %v479
        %v484 = vpack.c.b16 %v482, %v481
        %v491 = vunpack.c.l.b16 %v447
        %v492 = vunpack.c.l.b16 %v448
        %v493 = vunpack.c.l.b16 %v449
        %v494 = vunpack.c.l.b16 %v450
        %v495 = vpack.c.b16 %v492, %v491
        %v496 = vpack.c.b16 %v494, %v493
        %v499 = vld [vmem:[#allocation7] sm:$0xf]
        %v500 = vld [vmem:[#allocation7 + $0x4] sm:$0xf]
        %v501 = vld [vmem:[#allocation7 + $0x8] sm:$0xf]
        %v502 = vld [vmem:[#allocation7 + $0xc] sm:$0xf]
        %v507 = vunpack.c.l.b16 %v499
        %v508 = vunpack.c.l.b16 %v500
        %v509 = vunpack.c.l.b16 %v501
        %v510 = vunpack.c.l.b16 %v502
        %v511 = vpack.c.b16 %v508, %v507
        %v512 = vpack.c.b16 %v510, %v509
        %vm513 = vcmask 261120
        %v515 = vsel %vm513, %v511, 0
        %v518 = vsel %vm513, %v512, 0
        %520 = vmatpush.bf16.msra.mxu0 0
        %521 = vmatpush.bf16.msra.mxu0 0
        %522 = vmatpush.bf16.msra.mxu0 0
        %523 = vmatpush.bf16.msra.mxu0 0
        %524 = vmatpush.bf16.msra.mxu0 0
        %525 = vmatpush.bf16.msra.mxu0 0
        %526 = vmatpush.bf16.msra.mxu0 %v460
        %527 = vmatpush.bf16.msra.mxu0 %v459
        %528 = vmatmul.bf16.gmra.mxu0 %v515
        %v529 = vpop.f32.mrf.mxu0
        %v530 = vadd.f32 0.0, %v529
        %v531 = vpop.f32.mrf.mxu0
        %v532 = vadd.f32 0.0, %v531
        %533 = vmatmul.bf16.gmra.mxu0 %v518
        %v534 = vpop.f32.mrf.mxu0
        %v535 = vadd.f32 0.0, %v534
        %v536 = vpop.f32.mrf.mxu0
        %v537 = vadd.f32 0.0, %v536
        %538 = vdwg.mxu0
        %539 = vmatpush.bf16.msra.mxu0 0
        %540 = vmatpush.bf16.msra.mxu0 0
        %541 = vmatpush.bf16.msra.mxu0 0
        %542 = vmatpush.bf16.msra.mxu0 0
        %543 = vmatpush.bf16.msra.mxu0 0
        %544 = vmatpush.bf16.msra.mxu0 0
        %545 = vmatpush.bf16.msra.mxu0 %v472
        %546 = vmatpush.bf16.msra.mxu0 %v471
        %547 = vmatmul.bf16.gmra.mxu0 %v515
        %v548 = vpop.f32.mrf.mxu0
        %v549 = vadd.f32 0.0, %v548
        %v550 = vpop.f32.mrf.mxu0
        %v551 = vadd.f32 0.0, %v550
        %552 = vmatmul.bf16.gmra.mxu0 %v518
        %v553 = vpop.f32.mrf.mxu0
        %v554 = vadd.f32 0.0, %v553
        %v555 = vpop.f32.mrf.mxu0
        %v556 = vadd.f32 0.0, %v555
        %557 = vdwg.mxu0
        %558 = vmatpush.bf16.msra.mxu0 0
        %559 = vmatpush.bf16.msra.mxu0 0
        %560 = vmatpush.bf16.msra.mxu0 0
        %561 = vmatpush.bf16.msra.mxu0 0
        %562 = vmatpush.bf16.msra.mxu0 0
        %563 = vmatpush.bf16.msra.mxu0 0
        %564 = vmatpush.bf16.msra.mxu0 %v484
        %565 = vmatpush.bf16.msra.mxu0 %v483
        %566 = vmatmul.bf16.gmra.mxu0 %v515
        %v567 = vpop.f32.mrf.mxu0
        %v568 = vadd.f32 0.0, %v567
        %v569 = vpop.f32.mrf.mxu0
        %v570 = vadd.f32 0.0, %v569
        %571 = vmatmul.bf16.gmra.mxu0 %v518
        %v572 = vpop.f32.mrf.mxu0
        %v573 = vadd.f32 0.0, %v572
        %v574 = vpop.f32.mrf.mxu0
        %v575 = vadd.f32 0.0, %v574
        %576 = vdwg.mxu0
        %577 = vmatpush.bf16.msra.mxu0 0
        %578 = vmatpush.bf16.msra.mxu0 0
        %579 = vmatpush.bf16.msra.mxu0 0
        %580 = vmatpush.bf16.msra.mxu0 0
        %581 = vmatpush.bf16.msra.mxu0 0
        %582 = vmatpush.bf16.msra.mxu0 0
        %583 = vmatpush.bf16.msra.mxu0 %v496
        %584 = vmatpush.bf16.msra.mxu0 %v495
        %585 = vmatmul.bf16.gmra.mxu0 %v515
        %v586 = vpop.f32.mrf.mxu0
        %v587 = vadd.f32 0.0, %v586
        %v588 = vpop.f32.mrf.mxu0
        %v589 = vadd.f32 0.0, %v588
        %590 = vmatmul.bf16.gmra.mxu0 %v518
        %v591 = vpop.f32.mrf.mxu0
        %v592 = vadd.f32 0.0, %v591
        %v593 = vpop.f32.mrf.mxu0
        %v594 = vadd.f32 0.0, %v593
        %595 = vdwg.mxu0
        %v596 = vld [vmem:[#allocation8] sm:$0xff]
        %v597 = vld [vmem:[#allocation8 + $0x8] sm:$0xff]
        %v598 = vld [vmem:[#allocation8 + $0x10] sm:$0xff]
        %v599 = vld [vmem:[#allocation8 + $0x18] sm:$0xff]
        %v600 = vadd.f32 %v530, %v596
        %v601 = vadd.f32 %v532, %v597
        %v602 = vadd.f32 %v535, %v598
        %v603 = vadd.f32 %v537, %v599
        %v604 = vadd.f32 %v549, %v596
        %v605 = vadd.f32 %v551, %v597
        %v606 = vadd.f32 %v554, %v598
        %v607 = vadd.f32 %v556, %v599
        %v608 = vadd.f32 %v568, %v596
        %v609 = vadd.f32 %v570, %v597
        %v610 = vadd.f32 %v573, %v598
        %v611 = vadd.f32 %v575, %v599
        %v612 = vadd.f32 %v587, %v596
        %v613 = vadd.f32 %v589, %v597
        %v614 = vadd.f32 %v592, %v598
        %v615 = vadd.f32 %v594, %v599
        %v616 = vperm.slane %v384, 5
        %v617 = vmul.f32 %v616, %v600
        %v618 = vmul.f32 %v616, %v601
        %v619 = vmul.f32 %v616, %v602
        %v620 = vmul.f32 %v616, %v603
        %v621 = vmul.f32 %v616, %v604
        %v622 = vmul.f32 %v616, %v605
        %v623 = vmul.f32 %v616, %v606
        %v624 = vmul.f32 %v616, %v607
        %v625 = vmul.f32 %v616, %v608
        %v626 = vmul.f32 %v616, %v609
        %v627 = vmul.f32 %v616, %v610
        %v628 = vmul.f32 %v616, %v611
        %v629 = vmul.f32 %v616, %v612
        %v630 = vmul.f32 %v616, %v613
        %v631 = vmul.f32 %v616, %v614
        %v632 = vmul.f32 %v616, %v615
        %v633 = vadd.f32 %v385, %v617
        %v634 = vadd.f32 %v386, %v618
        %v635 = vadd.f32 %v387, %v619
        %v636 = vadd.f32 %v388, %v620
        %v637 = vadd.f32 %v389, %v621
        %v638 = vadd.f32 %v390, %v622
        %v639 = vadd.f32 %v391, %v623
        %v640 = vadd.f32 %v392, %v624
        %v641 = vadd.f32 %v393, %v625
        %v642 = vadd.f32 %v394, %v626
        %v643 = vadd.f32 %v395, %v627
        %v644 = vadd.f32 %v396, %v628
        %v645 = vadd.f32 %v397, %v629
        %v646 = vadd.f32 %v398, %v630
        %v647 = vadd.f32 %v399, %v631
        %v648 = vadd.f32 %v400, %v632
        %v649 = vperm.slane %v384, 2
        %v650 = vmul.f32 %v649, %v633
        %v651 = vmul.f32 %v649, %v634
        %v652 = vmul.f32 %v649, %v635
        %v653 = vmul.f32 %v649, %v636
        %v654 = vmul.f32 %v649, %v637
        %v655 = vmul.f32 %v649, %v638
        %v656 = vmul.f32 %v649, %v639
        %v657 = vmul.f32 %v649, %v640
        %v658 = vmul.f32 %v649, %v641
        %v659 = vmul.f32 %v649, %v642
        %v660 = vmul.f32 %v649, %v643
        %v661 = vmul.f32 %v649, %v644
        %v662 = vmul.f32 %v649, %v645
        %v663 = vmul.f32 %v649, %v646
        %v664 = vmul.f32 %v649, %v647
        %v665 = vmul.f32 %v649, %v648
        %v666 = vperm.slane %v384, 3
        %v667 = vadd.f32 %v666, %v650
        %v668 = vadd.f32 %v666, %v651
        %v669 = vadd.f32 %v666, %v652
        %v670 = vadd.f32 %v666, %v653
        %v671 = vadd.f32 %v666, %v654
        %v672 = vadd.f32 %v666, %v655
        %v673 = vadd.f32 %v666, %v656
        %v674 = vadd.f32 %v666, %v657
        %v675 = vadd.f32 %v666, %v658
        %v676 = vadd.f32 %v666, %v659
        %v677 = vadd.f32 %v666, %v660
        %v678 = vadd.f32 %v666, %v661
        %v679 = vadd.f32 %v666, %v662
        %v680 = vadd.f32 %v666, %v663
        %v681 = vadd.f32 %v666, %v664
        %v682 = vadd.f32 %v666, %v665
        %v683 = vpack.c.bf16 %v668, %v667
        %v684 = vpack.c.bf16 %v670, %v669
        %v685 = vpack.c.bf16 %v672, %v671
        %v686 = vpack.c.bf16 %v674, %v673
        %v687 = vpack.c.bf16 %v676, %v675
        %v688 = vpack.c.bf16 %v678, %v677
        %v689 = vpack.c.bf16 %v680, %v679
        %v690 = vpack.c.bf16 %v682, %v681
        %v691 = vld [vmem:[#allocation10] sm:$0xff]
        %v692 = vld [vmem:[#allocation10 + $0x8] sm:$0xff]
        %v693 = vld [vmem:[#allocation10 + $0x10] sm:$0xff]
        %v694 = vld [vmem:[#allocation10 + $0x18] sm:$0xff]
        %v695 = vld [vmem:[#allocation10 + $0x20] sm:$0xff]
        %v696 = vld [vmem:[#allocation10 + $0x28] sm:$0xff]
        %v697 = vld [vmem:[#allocation10 + $0x30] sm:$0xff]
        %v698 = vld [vmem:[#allocation10 + $0x38] sm:$0xff]
        %v699 = vld [vmem:[#allocation10 + $0x40] sm:$0xff]
        %v700 = vld [vmem:[#allocation10 + $0x48] sm:$0xff]
        %v701 = vld [vmem:[#allocation10 + $0x50] sm:$0xff]
        %v702 = vld [vmem:[#allocation10 + $0x58] sm:$0xff]
        %v703 = vld [vmem:[#allocation10 + $0x60] sm:$0xff]
        %v704 = vld [vmem:[#allocation10 + $0x68] sm:$0xff]
        %v705 = vld [vmem:[#allocation10 + $0x70] sm:$0xff]
        %v706 = vld [vmem:[#allocation10 + $0x78] sm:$0xff]
        %v707 = vld [vmem:[#allocation10 + $0x80] sm:$0xff]
        %v708 = vld [vmem:[#allocation10 + $0x88] sm:$0xff]
        %v709 = vld [vmem:[#allocation10 + $0x90] sm:$0xff]
        %v710 = vld [vmem:[#allocation10 + $0x98] sm:$0xff]
        %v711 = vld [vmem:[#allocation10 + $0xa0] sm:$0xff]
        %v712 = vld [vmem:[#allocation10 + $0xa8] sm:$0xff]
        %v713 = vld [vmem:[#allocation10 + $0xb0] sm:$0xff]
        %v714 = vld [vmem:[#allocation10 + $0xb8] sm:$0xff]
        %v715 = vld [vmem:[#allocation10 + $0xc0] sm:$0xff]
        %v716 = vld [vmem:[#allocation10 + $0xc8] sm:$0xff]
        %v717 = vld [vmem:[#allocation10 + $0xd0] sm:$0xff]
        %v718 = vld [vmem:[#allocation10 + $0xd8] sm:$0xff]
        %v719 = vld [vmem:[#allocation10 + $0xe0] sm:$0xff]
        %v720 = vld [vmem:[#allocation10 + $0xe8] sm:$0xff]
        %v721 = vld [vmem:[#allocation10 + $0xf0] sm:$0xff]
        %v722 = vld [vmem:[#allocation10 + $0xf8] sm:$0xff]
        %v723 = vld [vmem:[%s5] sm:$0xf]
        %v725 = vperm.slane %v723, 0
        %v726 = vperm.slane %v723, 1
        %v727 = vperm.slane %v723, 2
        %v728 = vperm.slane %v723, 3
        %v765 = vunpack.c.l.b16 %v691
        %v766 = vunpack.c.h.b16 %v691
        %v767 = vunpack.c.l.b16 %v692
        %v768 = vunpack.c.h.b16 %v692
        %v769 = vunpack.c.l.b16 %v693
        %v770 = vunpack.c.h.b16 %v693
        %v771 = vunpack.c.l.b16 %v694
        %v772 = vunpack.c.h.b16 %v694
        %v773 = vunpack.c.l.b16 %v695
        %v774 = vunpack.c.h.b16 %v695
        %v775 = vunpack.c.l.b16 %v696
        %v776 = vunpack.c.h.b16 %v696
        %v777 = vunpack.c.l.b16 %v697
        %v778 = vunpack.c.h.b16 %v697
        %v779 = vunpack.c.l.b16 %v698
        %v780 = vunpack.c.h.b16 %v698
        %v781 = vunpack.c.l.b16 %v699
        %v782 = vunpack.c.h.b16 %v699
        %v783 = vunpack.c.l.b16 %v700
        %v784 = vunpack.c.h.b16 %v700
        %v785 = vunpack.c.l.b16 %v701
        %v786 = vunpack.c.h.b16 %v701
        %v787 = vunpack.c.l.b16 %v702
        %v788 = vunpack.c.h.b16 %v702
        %v789 = vunpack.c.l.b16 %v703
        %v790 = vunpack.c.h.b16 %v703
        %v791 = vunpack.c.l.b16 %v704
        %v792 = vunpack.c.h.b16 %v704
        %v793 = vunpack.c.l.b16 %v705
        %v794 = vunpack.c.h.b16 %v705
        %v795 = vunpack.c.l.b16 %v706
        %v796 = vunpack.c.h.b16 %v706
        %v797 = vunpack.c.l.b16 %v707
        %v798 = vunpack.c.h.b16 %v707
        %v799 = vunpack.c.l.b16 %v708
        %v800 = vunpack.c.h.b16 %v708
        %v801 = vunpack.c.l.b16 %v709
        %v802 = vunpack.c.h.b16 %v709
        %v803 = vunpack.c.l.b16 %v710
        %v804 = vunpack.c.h.b16 %v710
        %v805 = vunpack.c.l.b16 %v711
        %v806 = vunpack.c.h.b16 %v711
        %v807 = vunpack.c.l.b16 %v712
        %v808 = vunpack.c.h.b16 %v712
        %v809 = vunpack.c.l.b16 %v713
        %v810 = vunpack.c.h.b16 %v713
        %v811 = vunpack.c.l.b16 %v714
        %v812 = vunpack.c.h.b16 %v714
        %v813 = vunpack.c.l.b16 %v715
        %v814 = vunpack.c.h.b16 %v715
        %v815 = vunpack.c.l.b16 %v716
        %v816 = vunpack.c.h.b16 %v716
        %v817 = vunpack.c.l.b16 %v717
        %v818 = vunpack.c.h.b16 %v717
        %v819 = vunpack.c.l.b16 %v718
        %v820 = vunpack.c.h.b16 %v718
        %v821 = vunpack.c.l.b16 %v719
        %v822 = vunpack.c.h.b16 %v719
        %v823 = vunpack.c.l.b16 %v720
        %v824 = vunpack.c.h.b16 %v720
        %v825 = vunpack.c.l.b16 %v721
        %v826 = vunpack.c.h.b16 %v721
        %v827 = vunpack.c.l.b16 %v722
        %v828 = vunpack.c.h.b16 %v722
        %v829 = vpack.c.b16 %v769, %v765
        %v830 = vpack.c.b16 %v770, %v766
        %v831 = vpack.c.b16 %v771, %v767
        %v832 = vpack.c.b16 %v772, %v768
        %v833 = vpack.c.b16 %v777, %v773
        %v834 = vpack.c.b16 %v778, %v774
        %v835 = vpack.c.b16 %v779, %v775
        %v836 = vpack.c.b16 %v780, %v776
        %v837 = vpack.c.b16 %v785, %v781
        %v838 = vpack.c.b16 %v786, %v782
        %v839 = vpack.c.b16 %v787, %v783
        %v840 = vpack.c.b16 %v788, %v784
        %v841 = vpack.c.b16 %v793, %v789
        %v842 = vpack.c.b16 %v794, %v790
        %v843 = vpack.c.b16 %v795, %v791
        %v844 = vpack.c.b16 %v796, %v792
        %v845 = vpack.c.b16 %v801, %v797
        %v846 = vpack.c.b16 %v802, %v798
        %v847 = vpack.c.b16 %v803, %v799
        %v848 = vpack.c.b16 %v804, %v800
        %v849 = vpack.c.b16 %v809, %v805
        %v850 = vpack.c.b16 %v810, %v806
        %v851 = vpack.c.b16 %v811, %v807
        %v852 = vpack.c.b16 %v812, %v808
        %v853 = vpack.c.b16 %v817, %v813
        %v854 = vpack.c.b16 %v818, %v814
        %v855 = vpack.c.b16 %v819, %v815
        %v856 = vpack.c.b16 %v820, %v816
        %v857 = vpack.c.b16 %v825, %v821
        %v858 = vpack.c.b16 %v826, %v822
        %v859 = vpack.c.b16 %v827, %v823
        %v860 = vpack.c.b16 %v828, %v824
        %893 = vmatpush.bf16.msra.mxu0 %v857
        %894 = vmatpush.bf16.msra.mxu0 %v853
        %895 = vmatpush.bf16.msra.mxu0 %v849
        %896 = vmatpush.bf16.msra.mxu0 %v845
        %897 = vmatpush.bf16.msra.mxu0 %v841
        %898 = vmatpush.bf16.msra.mxu0 %v837
        %899 = vmatpush.bf16.msra.mxu0 %v833
        %900 = vmatpush.bf16.msra.mxu0 %v829
        %901 = vmatmul.bf16.gmra.mxu0 %v683
        %v902 = vpop.f32.mrf.mxu0
        %v903 = vadd.f32 %v725, %v902
        %v904 = vpop.f32.mrf.mxu0
        %v905 = vadd.f32 %v725, %v904
        %906 = vmatmul.bf16.gmra.mxu0 %v684
        %v907 = vpop.f32.mrf.mxu0
        %v908 = vadd.f32 %v725, %v907
        %v909 = vpop.f32.mrf.mxu0
        %v910 = vadd.f32 %v725, %v909
        %911 = vmatmul.bf16.gmra.mxu0 %v685
        %v912 = vpop.f32.mrf.mxu0
        %v913 = vadd.f32 %v725, %v912
        %v914 = vpop.f32.mrf.mxu0
        %v915 = vadd.f32 %v725, %v914
        %916 = vmatmul.bf16.gmra.mxu0 %v686
        %v917 = vpop.f32.mrf.mxu0
        %v918 = vadd.f32 %v725, %v917
        %v919 = vpop.f32.mrf.mxu0
        %v920 = vadd.f32 %v725, %v919
        %921 = vmatmul.bf16.gmra.mxu0 %v687
        %v922 = vpop.f32.mrf.mxu0
        %v923 = vadd.f32 %v725, %v922
        %v924 = vpop.f32.mrf.mxu0
        %v925 = vadd.f32 %v725, %v924
        %926 = vmatmul.bf16.gmra.mxu0 %v688
        %v927 = vpop.f32.mrf.mxu0
        %v928 = vadd.f32 %v725, %v927
        %v929 = vpop.f32.mrf.mxu0
        %v930 = vadd.f32 %v725, %v929
        %931 = vmatmul.bf16.gmra.mxu0 %v689
        %v932 = vpop.f32.mrf.mxu0
        %v933 = vadd.f32 %v725, %v932
        %v934 = vpop.f32.mrf.mxu0
        %v935 = vadd.f32 %v725, %v934
        %936 = vmatmul.bf16.gmra.mxu0 %v690
        %v937 = vpop.f32.mrf.mxu0
        %v938 = vadd.f32 %v725, %v937
        %v939 = vpop.f32.mrf.mxu0
        %v940 = vadd.f32 %v725, %v939
        %941 = vdwg.mxu0
        %942 = vmatpush.bf16.msra.mxu0 %v858
        %943 = vmatpush.bf16.msra.mxu0 %v854
        %944 = vmatpush.bf16.msra.mxu0 %v850
        %945 = vmatpush.bf16.msra.mxu0 %v846
        %946 = vmatpush.bf16.msra.mxu0 %v842
        %947 = vmatpush.bf16.msra.mxu0 %v838
        %948 = vmatpush.bf16.msra.mxu0 %v834
        %949 = vmatpush.bf16.msra.mxu0 %v830
        %950 = vmatmul.bf16.gmra.mxu0 %v683
        %v951 = vpop.f32.mrf.mxu0
        %v952 = vadd.f32 %v726, %v951
        %v953 = vpop.f32.mrf.mxu0
        %v954 = vadd.f32 %v726, %v953
        %955 = vmatmul.bf16.gmra.mxu0 %v684
        %v956 = vpop.f32.mrf.mxu0
        %v957 = vadd.f32 %v726, %v956
        %v958 = vpop.f32.mrf.mxu0
        %v959 = vadd.f32 %v726, %v958
        %960 = vmatmul.bf16.gmra.mxu0 %v685
        %v961 = vpop.f32.mrf.mxu0
        %v962 = vadd.f32 %v726, %v961
        %v963 = vpop.f32.mrf.mxu0
        %v964 = vadd.f32 %v726, %v963
        %965 = vmatmul.bf16.gmra.mxu0 %v686
        %v966 = vpop.f32.mrf.mxu0
        %v967 = vadd.f32 %v726, %v966
        %v968 = vpop.f32.mrf.mxu0
        %v969 = vadd.f32 %v726, %v968
        %970 = vmatmul.bf16.gmra.mxu0 %v687
        %v971 = vpop.f32.mrf.mxu0
        %v972 = vadd.f32 %v726, %v971
        %v973 = vpop.f32.mrf.mxu0
        %v974 = vadd.f32 %v726, %v973
        %975 = vmatmul.bf16.gmra.mxu0 %v688
        %v976 = vpop.f32.mrf.mxu0
        %v977 = vadd.f32 %v726, %v976
        %v978 = vpop.f32.mrf.mxu0
        %v979 = vadd.f32 %v726, %v978
        %980 = vmatmul.bf16.gmra.mxu0 %v689
        %v981 = vpop.f32.mrf.mxu0
        %v982 = vadd.f32 %v726, %v981
        %v983 = vpop.f32.mrf.mxu0
        %v984 = vadd.f32 %v726, %v983
        %985 = vmatmul.bf16.gmra.mxu0 %v690
        %v986 = vpop.f32.mrf.mxu0
        %v987 = vadd.f32 %v726, %v986
        %v988 = vpop.f32.mrf.mxu0
        %v989 = vadd.f32 %v726, %v988
        %990 = vdwg.mxu0
        %991 = vmatpush.bf16.msra.mxu0 %v859
        %992 = vmatpush.bf16.msra.mxu0 %v855
        %993 = vmatpush.bf16.msra.mxu0 %v851
        %994 = vmatpush.bf16.msra.mxu0 %v847
        %995 = vmatpush.bf16.msra.mxu0 %v843
        %996 = vmatpush.bf16.msra.mxu0 %v839
        %997 = vmatpush.bf16.msra.mxu0 %v835
        %998 = vmatpush.bf16.msra.mxu0 %v831
        %999 = vmatmul.bf16.gmra.mxu0 %v683
        %v1000 = vpop.f32.mrf.mxu0
        %v1001 = vadd.f32 %v727, %v1000
        %v1002 = vpop.f32.mrf.mxu0
        %v1003 = vadd.f32 %v727, %v1002
        %1004 = vmatmul.bf16.gmra.mxu0 %v684
        %v1005 = vpop.f32.mrf.mxu0
        %v1006 = vadd.f32 %v727, %v1005
        %v1007 = vpop.f32.mrf.mxu0
        %v1008 = vadd.f32 %v727, %v1007
        %1009 = vmatmul.bf16.gmra.mxu0 %v685
        %v1010 = vpop.f32.mrf.mxu0
        %v1011 = vadd.f32 %v727, %v1010
        %v1012 = vpop.f32.mrf.mxu0
        %v1013 = vadd.f32 %v727, %v1012
        %1014 = vmatmul.bf16.gmra.mxu0 %v686
        %v1015 = vpop.f32.mrf.mxu0
        %v1016 = vadd.f32 %v727, %v1015
        %v1017 = vpop.f32.mrf.mxu0
        %v1018 = vadd.f32 %v727, %v1017
        %1019 = vmatmul.bf16.gmra.mxu0 %v687
        %v1020 = vpop.f32.mrf.mxu0
        %v1021 = vadd.f32 %v727, %v1020
        %v1022 = vpop.f32.mrf.mxu0
        %v1023 = vadd.f32 %v727, %v1022
        %1024 = vmatmul.bf16.gmra.mxu0 %v688
        %v1025 = vpop.f32.mrf.mxu0
        %v1026 = vadd.f32 %v727, %v1025
        %v1027 = vpop.f32.mrf.mxu0
        %v1028 = vadd.f32 %v727, %v1027
        %1029 = vmatmul.bf16.gmra.mxu0 %v689
        %v1030 = vpop.f32.mrf.mxu0
        %v1031 = vadd.f32 %v727, %v1030
        %v1032 = vpop.f32.mrf.mxu0
        %v1033 = vadd.f32 %v727, %v1032
        %1034 = vmatmul.bf16.gmra.mxu0 %v690
        %v1035 = vpop.f32.mrf.mxu0
        %v1036 = vadd.f32 %v727, %v1035
        %v1037 = vpop.f32.mrf.mxu0
        %v1038 = vadd.f32 %v727, %v1037
        %1039 = vdwg.mxu0
        %1040 = vmatpush.bf16.msra.mxu0 %v860
        %1041 = vmatpush.bf16.msra.mxu0 %v856
        %1042 = vmatpush.bf16.msra.mxu0 %v852
        %1043 = vmatpush.bf16.msra.mxu0 %v848
        %1044 = vmatpush.bf16.msra.mxu0 %v844
        %1045 = vmatpush.bf16.msra.mxu0 %v840
        %1046 = vmatpush.bf16.msra.mxu0 %v836
        %1047 = vmatpush.bf16.msra.mxu0 %v832
        %1048 = vmatmul.bf16.gmra.mxu0 %v683
        %v1049 = vpop.f32.mrf.mxu0
        %v1050 = vadd.f32 %v728, %v1049
        %v1051 = vpop.f32.mrf.mxu0
        %v1052 = vadd.f32 %v728, %v1051
        %1053 = vmatmul.bf16.gmra.mxu0 %v684
        %v1054 = vpop.f32.mrf.mxu0
        %v1055 = vadd.f32 %v728, %v1054
        %v1056 = vpop.f32.mrf.mxu0
        %v1057 = vadd.f32 %v728, %v1056
        %1058 = vmatmul.bf16.gmra.mxu0 %v685
        %v1059 = vpop.f32.mrf.mxu0
        %v1060 = vadd.f32 %v728, %v1059
        %v1061 = vpop.f32.mrf.mxu0
        %v1062 = vadd.f32 %v728, %v1061
        %1063 = vmatmul.bf16.gmra.mxu0 %v686
        %v1064 = vpop.f32.mrf.mxu0
        %v1065 = vadd.f32 %v728, %v1064
        %v1066 = vpop.f32.mrf.mxu0
        %v1067 = vadd.f32 %v728, %v1066
        %1068 = vmatmul.bf16.gmra.mxu0 %v687
        %v1069 = vpop.f32.mrf.mxu0
        %v1070 = vadd.f32 %v728, %v1069
        %v1071 = vpop.f32.mrf.mxu0
        %v1072 = vadd.f32 %v728, %v1071
        %1073 = vmatmul.bf16.gmra.mxu0 %v688
        %v1074 = vpop.f32.mrf.mxu0
        %v1075 = vadd.f32 %v728, %v1074
        %v1076 = vpop.f32.mrf.mxu0
        %v1077 = vadd.f32 %v728, %v1076
        %1078 = vmatmul.bf16.gmra.mxu0 %v689
        %v1079 = vpop.f32.mrf.mxu0
        %v1080 = vadd.f32 %v728, %v1079
        %v1081 = vpop.f32.mrf.mxu0
        %v1082 = vadd.f32 %v728, %v1081
        %1083 = vmatmul.bf16.gmra.mxu0 %v690
        %v1084 = vpop.f32.mrf.mxu0
        %v1085 = vadd.f32 %v728, %v1084
        %v1086 = vpop.f32.mrf.mxu0
        %v1087 = vadd.f32 %v728, %v1086
        %1088 = vdwg.mxu0
        %v1089 = vmul.f32 %v903, %v903
        %v1090 = vmul.f32 %v952, %v952
        %v1091 = vmul.f32 %v1001, %v1001
        %v1092 = vmul.f32 %v1050, %v1050
        %v1093 = vmul.f32 %v905, %v905
        %v1094 = vmul.f32 %v954, %v954
        %v1095 = vmul.f32 %v1003, %v1003
        %v1096 = vmul.f32 %v1052, %v1052
        %v1097 = vmul.f32 %v908, %v908
        %v1098 = vmul.f32 %v957, %v957
        %v1099 = vmul.f32 %v1006, %v1006
        %v1100 = vmul.f32 %v1055, %v1055
        %v1101 = vmul.f32 %v910, %v910
        %v1102 = vmul.f32 %v959, %v959
        %v1103 = vmul.f32 %v1008, %v1008
        %v1104 = vmul.f32 %v1057, %v1057
        %v1105 = vmul.f32 %v913, %v913
        %v1106 = vmul.f32 %v962, %v962
        %v1107 = vmul.f32 %v1011, %v1011
        %v1108 = vmul.f32 %v1060, %v1060
        %v1109 = vmul.f32 %v915, %v915
        %v1110 = vmul.f32 %v964, %v964
        %v1111 = vmul.f32 %v1013, %v1013
        %v1112 = vmul.f32 %v1062, %v1062
        %v1113 = vmul.f32 %v918, %v918
        %v1114 = vmul.f32 %v967, %v967
        %v1115 = vmul.f32 %v1016, %v1016
        %v1116 = vmul.f32 %v1065, %v1065
        %v1117 = vmul.f32 %v920, %v920
        %v1118 = vmul.f32 %v969, %v969
        %v1119 = vmul.f32 %v1018, %v1018
        %v1120 = vmul.f32 %v1067, %v1067
        %v1121 = vmul.f32 %v923, %v923
        %v1122 = vmul.f32 %v972, %v972
        %v1123 = vmul.f32 %v1021, %v1021
        %v1124 = vmul.f32 %v1070, %v1070
        %v1125 = vmul.f32 %v925, %v925
        %v1126 = vmul.f32 %v974, %v974
        %v1127 = vmul.f32 %v1023, %v1023
        %v1128 = vmul.f32 %v1072, %v1072
        %v1129 = vmul.f32 %v928, %v928
        %v1130 = vmul.f32 %v977, %v977
        %v1131 = vmul.f32 %v1026, %v1026
        %v1132 = vmul.f32 %v1075, %v1075
        %v1133 = vmul.f32 %v930, %v930
        %v1134 = vmul.f32 %v979, %v979
        %v1135 = vmul.f32 %v1028, %v1028
        %v1136 = vmul.f32 %v1077, %v1077
        %v1137 = vmul.f32 %v933, %v933
        %v1138 = vmul.f32 %v982, %v982
        %v1139 = vmul.f32 %v1031, %v1031
        %v1140 = vmul.f32 %v1080, %v1080
        %v1141 = vmul.f32 %v935, %v935
        %v1142 = vmul.f32 %v984, %v984
        %v1143 = vmul.f32 %v1033, %v1033
        %v1144 = vmul.f32 %v1082, %v1082
        %v1145 = vmul.f32 %v938, %v938
        %v1146 = vmul.f32 %v987, %v987
        %v1147 = vmul.f32 %v1036, %v1036
        %v1148 = vmul.f32 %v1085, %v1085
        %v1149 = vmul.f32 %v940, %v940
        %v1150 = vmul.f32 %v989, %v989
        %v1151 = vmul.f32 %v1038, %v1038
        %v1152 = vmul.f32 %v1087, %v1087
        %v1153 = vmul.f32 %v903, %v1089
        %v1154 = vmul.f32 %v952, %v1090
        %v1155 = vmul.f32 %v1001, %v1091
        %v1156 = vmul.f32 %v1050, %v1092
        %v1157 = vmul.f32 %v905, %v1093
        %v1158 = vmul.f32 %v954, %v1094
        %v1159 = vmul.f32 %v1003, %v1095
        %v1160 = vmul.f32 %v1052, %v1096
        %v1161 = vmul.f32 %v908, %v1097
        %v1162 = vmul.f32 %v957, %v1098
        %v1163 = vmul.f32 %v1006, %v1099
        %v1164 = vmul.f32 %v1055, %v1100
        %v1165 = vmul.f32 %v910, %v1101
        %v1166 = vmul.f32 %v959, %v1102
        %v1167 = vmul.f32 %v1008, %v1103
        %v1168 = vmul.f32 %v1057, %v1104
        %v1169 = vmul.f32 %v913, %v1105
        %v1170 = vmul.f32 %v962, %v1106
        %v1171 = vmul.f32 %v1011, %v1107
        %v1172 = vmul.f32 %v1060, %v1108
        %v1173 = vmul.f32 %v915, %v1109
        %v1174 = vmul.f32 %v964, %v1110
        %v1175 = vmul.f32 %v1013, %v1111
        %v1176 = vmul.f32 %v1062, %v1112
        %v1177 = vmul.f32 %v918, %v1113
        %v1178 = vmul.f32 %v967, %v1114
        %v1179 = vmul.f32 %v1016, %v1115
        %v1180 = vmul.f32 %v1065, %v1116
        %v1181 = vmul.f32 %v920, %v1117
        %v1182 = vmul.f32 %v969, %v1118
        %v1183 = vmul.f32 %v1018, %v1119
        %v1184 = vmul.f32 %v1067, %v1120
        %v1185 = vmul.f32 %v923, %v1121
        %v1186 = vmul.f32 %v972, %v1122
        %v1187 = vmul.f32 %v1021, %v1123
        %v1188 = vmul.f32 %v1070, %v1124
        %v1189 = vmul.f32 %v925, %v1125
        %v1190 = vmul.f32 %v974, %v1126
        %v1191 = vmul.f32 %v1023, %v1127
        %v1192 = vmul.f32 %v1072, %v1128
        %v1193 = vmul.f32 %v928, %v1129
        %v1194 = vmul.f32 %v977, %v1130
        %v1195 = vmul.f32 %v1026, %v1131
        %v1196 = vmul.f32 %v1075, %v1132
        %v1197 = vmul.f32 %v930, %v1133
        %v1198 = vmul.f32 %v979, %v1134
        %v1199 = vmul.f32 %v1028, %v1135
        %v1200 = vmul.f32 %v1077, %v1136
        %v1201 = vmul.f32 %v933, %v1137
        %v1202 = vmul.f32 %v982, %v1138
        %v1203 = vmul.f32 %v1031, %v1139
        %v1204 = vmul.f32 %v1080, %v1140
        %v1205 = vmul.f32 %v935, %v1141
        %v1206 = vmul.f32 %v984, %v1142
        %v1207 = vmul.f32 %v1033, %v1143
        %v1208 = vmul.f32 %v1082, %v1144
        %v1209 = vmul.f32 %v938, %v1145
        %v1210 = vmul.f32 %v987, %v1146
        %v1211 = vmul.f32 %v1036, %v1147
        %v1212 = vmul.f32 %v1085, %v1148
        %v1213 = vmul.f32 %v940, %v1149
        %v1214 = vmul.f32 %v989, %v1150
        %v1215 = vmul.f32 %v1038, %v1151
        %v1216 = vmul.f32 %v1087, %v1152
        %v1217 = vmul.f32 %v1153, 0.044715
        %v1218 = vmul.f32 %v1154, 0.044715
        %v1219 = vmul.f32 %v1155, 0.044715
        %v1220 = vmul.f32 %v1156, 0.044715
        %v1221 = vmul.f32 %v1157, 0.044715
        %v1222 = vmul.f32 %v1158, 0.044715
        %v1223 = vmul.f32 %v1159, 0.044715
        %v1224 = vmul.f32 %v1160, 0.044715
        %v1225 = vmul.f32 %v1161, 0.044715
        %v1226 = vmul.f32 %v1162, 0.044715
        %v1227 = vmul.f32 %v1163, 0.044715
        %v1228 = vmul.f32 %v1164, 0.044715
        %v1229 = vmul.f32 %v1165, 0.044715
        %v1230 = vmul.f32 %v1166, 0.044715
        %v1231 = vmul.f32 %v1167, 0.044715
        %v1232 = vmul.f32 %v1168, 0.044715
        %v1233 = vmul.f32 %v1169, 0.044715
        %v1234 = vmul.f32 %v1170, 0.044715
        %v1235 = vmul.f32 %v1171, 0.044715
        %v1236 = vmul.f32 %v1172, 0.044715
        %v1237 = vmul.f32 %v1173, 0.044715
        %v1238 = vmul.f32 %v1174, 0.044715
        %v1239 = vmul.f32 %v1175, 0.044715
        %v1240 = vmul.f32 %v1176, 0.044715
        %v1241 = vmul.f32 %v1177, 0.044715
        %v1242 = vmul.f32 %v1178, 0.044715
        %v1243 = vmul.f32 %v1179, 0.044715
        %v1244 = vmul.f32 %v1180, 0.044715
        %v1245 = vmul.f32 %v1181, 0.044715
        %v1246 = vmul.f32 %v1182, 0.044715
        %v1247 = vmul.f32 %v1183, 0.044715
        %v1248 = vmul.f32 %v1184, 0.044715
        %v1249 = vmul.f32 %v1185, 0.044715
        %v1250 = vmul.f32 %v1186, 0.044715
        %v1251 = vmul.f32 %v1187, 0.044715
        %v1252 = vmul.f32 %v1188, 0.044715
        %v1253 = vmul.f32 %v1189, 0.044715
        %v1254 = vmul.f32 %v1190, 0.044715
        %v1255 = vmul.f32 %v1191, 0.044715
        %v1256 = vmul.f32 %v1192, 0.044715
        %v1257 = vmul.f32 %v1193, 0.044715
        %v1258 = vmul.f32 %v1194, 0.044715
        %v1259 = vmul.f32 %v1195, 0.044715
        %v1260 = vmul.f32 %v1196, 0.044715
        %v1261 = vmul.f32 %v1197, 0.044715
        %v1262 = vmul.f32 %v1198, 0.044715
        %v1263 = vmul.f32 %v1199, 0.044715
        %v1264 = vmul.f32 %v1200, 0.044715
        %v1265 = vmul.f32 %v1201, 0.044715
        %v1266 = vmul.f32 %v1202, 0.044715
        %v1267 = vmul.f32 %v1203, 0.044715
        %v1268 = vmul.f32 %v1204, 0.044715
        %v1269 = vmul.f32 %v1205, 0.044715
        %v1270 = vmul.f32 %v1206, 0.044715
        %v1271 = vmul.f32 %v1207, 0.044715
        %v1272 = vmul.f32 %v1208, 0.044715
        %v1273 = vmul.f32 %v1209, 0.044715
        %v1274 = vmul.f32 %v1210, 0.044715
        %v1275 = vmul.f32 %v1211, 0.044715
        %v1276 = vmul.f32 %v1212, 0.044715
        %v1277 = vmul.f32 %v1213, 0.044715
        %v1278 = vmul.f32 %v1214, 0.044715
        %v1279 = vmul.f32 %v1215, 0.044715
        %v1280 = vmul.f32 %v1216, 0.044715
        %v1281 = vadd.f32 %v903, %v1217
        %v1282 = vadd.f32 %v952, %v1218
        %v1283 = vadd.f32 %v1001, %v1219
        %v1284 = vadd.f32 %v1050, %v1220
        %v1285 = vadd.f32 %v905, %v1221
        %v1286 = vadd.f32 %v954, %v1222
        %v1287 = vadd.f32 %v1003, %v1223
        %v1288 = vadd.f32 %v1052, %v1224
        %v1289 = vadd.f32 %v908, %v1225
        %v1290 = vadd.f32 %v957, %v1226
        %v1291 = vadd.f32 %v1006, %v1227
        %v1292 = vadd.f32 %v1055, %v1228
        %v1293 = vadd.f32 %v910, %v1229
        %v1294 = vadd.f32 %v959, %v1230
        %v1295 = vadd.f32 %v1008, %v1231
        %v1296 = vadd.f32 %v1057, %v1232
        %v1297 = vadd.f32 %v913, %v1233
        %v1298 = vadd.f32 %v962, %v1234
        %v1299 = vadd.f32 %v1011, %v1235
        %v1300 = vadd.f32 %v1060, %v1236
        %v1301 = vadd.f32 %v915, %v1237
        %v1302 = vadd.f32 %v964, %v1238
        %v1303 = vadd.f32 %v1013, %v1239
        %v1304 = vadd.f32 %v1062, %v1240
        %v1305 = vadd.f32 %v918, %v1241
        %v1306 = vadd.f32 %v967, %v1242
        %v1307 = vadd.f32 %v1016, %v1243
        %v1308 = vadd.f32 %v1065, %v1244
        %v1309 = vadd.f32 %v920, %v1245
        %v1310 = vadd.f32 %v969, %v1246
        %v1311 = vadd.f32 %v1018, %v1247
        %v1312 = vadd.f32 %v1067, %v1248
        %v1313 = vadd.f32 %v923, %v1249
        %v1314 = vadd.f32 %v972, %v1250
        %v1315 = vadd.f32 %v1021, %v1251
        %v1316 = vadd.f32 %v1070, %v1252
        %v1317 = vadd.f32 %v925, %v1253
        %v1318 = vadd.f32 %v974, %v1254
        %v1319 = vadd.f32 %v1023, %v1255
        %v1320 = vadd.f32 %v1072, %v1256
        %v1321 = vadd.f32 %v928, %v1257
        %v1322 = vadd.f32 %v977, %v1258
        %v1323 = vadd.f32 %v1026, %v1259
        %v1324 = vadd.f32 %v1075, %v1260
        %v1325 = vadd.f32 %v930, %v1261
        %v1326 = vadd.f32 %v979, %v1262
        %v1327 = vadd.f32 %v1028, %v1263
        %v1328 = vadd.f32 %v1077, %v1264
        %v1329 = vadd.f32 %v933, %v1265
        %v1330 = vadd.f32 %v982, %v1266
        %v1331 = vadd.f32 %v1031, %v1267
        %v1332 = vadd.f32 %v1080, %v1268
        %v1333 = vadd.f32 %v935, %v1269
        %v1334 = vadd.f32 %v984, %v1270
        %v1335 = vadd.f32 %v1033, %v1271
        %v1336 = vadd.f32 %v1082, %v1272
        %v1337 = vadd.f32 %v938, %v1273
        %v1338 = vadd.f32 %v987, %v1274
        %v1339 = vadd.f32 %v1036, %v1275
        %v1340 = vadd.f32 %v1085, %v1276
        %v1341 = vadd.f32 %v940, %v1277
        %v1342 = vadd.f32 %v989, %v1278
        %v1343 = vadd.f32 %v1038, %v1279
        %v1344 = vadd.f32 %v1087, %v1280
        %v1345 = vmul.f32 %v1281, 0.7978846
        %v1346 = vmul.f32 %v1282, 0.7978846
        %v1347 = vmul.f32 %v1283, 0.7978846
        %v1348 = vmul.f32 %v1284, 0.7978846
        %v1349 = vmul.f32 %v1285, 0.7978846
        %v1350 = vmul.f32 %v1286, 0.7978846
        %v1351 = vmul.f32 %v1287, 0.7978846
        %v1352 = vmul.f32 %v1288, 0.7978846
        %v1353 = vmul.f32 %v1289, 0.7978846
        %v1354 = vmul.f32 %v1290, 0.7978846
        %v1355 = vmul.f32 %v1291, 0.7978846
        %v1356 = vmul.f32 %v1292, 0.7978846
        %v1357 = vmul.f32 %v1293, 0.7978846
        %v1358 = vmul.f32 %v1294, 0.7978846
        %v1359 = vmul.f32 %v1295, 0.7978846
        %v1360 = vmul.f32 %v1296, 0.7978846
        %v1361 = vmul.f32 %v1297, 0.7978846
        %v1362 = vmul.f32 %v1298, 0.7978846
        %v1363 = vmul.f32 %v1299, 0.7978846
        %v1364 = vmul.f32 %v1300, 0.7978846
        %v1365 = vmul.f32 %v1301, 0.7978846
        %v1366 = vmul.f32 %v1302, 0.7978846
        %v1367 = vmul.f32 %v1303, 0.7978846
        %v1368 = vmul.f32 %v1304, 0.7978846
        %v1369 = vmul.f32 %v1305, 0.7978846
        %v1370 = vmul.f32 %v1306, 0.7978846
        %v1371 = vmul.f32 %v1307, 0.7978846
        %v1372 = vmul.f32 %v1308, 0.7978846
        %v1373 = vmul.f32 %v1309, 0.7978846
        %v1374 = vmul.f32 %v1310, 0.7978846
        %v1375 = vmul.f32 %v1311, 0.7978846
        %v1376 = vmul.f32 %v1312, 0.7978846
        %v1377 = vmul.f32 %v1313, 0.7978846
        %v1378 = vmul.f32 %v1314, 0.7978846
        %v1379 = vmul.f32 %v1315, 0.7978846
        %v1380 = vmul.f32 %v1316, 0.7978846
        %v1381 = vmul.f32 %v1317, 0.7978846
        %v1382 = vmul.f32 %v1318, 0.7978846
        %v1383 = vmul.f32 %v1319, 0.7978846
        %v1384 = vmul.f32 %v1320, 0.7978846
        %v1385 = vmul.f32 %v1321, 0.7978846
        %v1386 = vmul.f32 %v1322, 0.7978846
        %v1387 = vmul.f32 %v1323, 0.7978846
        %v1388 = vmul.f32 %v1324, 0.7978846
        %v1389 = vmul.f32 %v1325, 0.7978846
        %v1390 = vmul.f32 %v1326, 0.7978846
        %v1391 = vmul.f32 %v1327, 0.7978846
        %v1392 = vmul.f32 %v1328, 0.7978846
        %v1393 = vmul.f32 %v1329, 0.7978846
        %v1394 = vmul.f32 %v1330, 0.7978846
        %v1395 = vmul.f32 %v1331, 0.7978846
        %v1396 = vmul.f32 %v1332, 0.7978846
        %v1397 = vmul.f32 %v1333, 0.7978846
        %v1398 = vmul.f32 %v1334, 0.7978846
        %v1399 = vmul.f32 %v1335, 0.7978846
        %v1400 = vmul.f32 %v1336, 0.7978846
        %v1401 = vmul.f32 %v1337, 0.7978846
        %v1402 = vmul.f32 %v1338, 0.7978846
        %v1403 = vmul.f32 %v1339, 0.7978846
        %v1404 = vmul.f32 %v1340, 0.7978846
        %v1405 = vmul.f32 %v1341, 0.7978846
        %v1406 = vmul.f32 %v1342, 0.7978846
        %v1407 = vmul.f32 %v1343, 0.7978846
        %v1408 = vmul.f32 %v1344, 0.7978846
        %v1409 = vtanh.pop %v1345
        %v1410 = vtanh.pop %v1346
        %v1411 = vtanh.pop %v1347
        %v1412 = vtanh.pop %v1348
        %v1413 = vtanh.pop %v1349
        %v1414 = vtanh.pop %v1350
        %v1415 = vtanh.pop %v1351
        %v1416 = vtanh.pop %v1352
        %v1417 = vtanh.pop %v1353
        %v1418 = vtanh.pop %v1354
        %v1419 = vtanh.pop %v1355
        %v1420 = vtanh.pop %v1356
        %v1421 = vtanh.pop %v1357
        %v1422 = vtanh.pop %v1358
        %v1423 = vtanh.pop %v1359
        %v1424 = vtanh.pop %v1360
        %v1425 = vtanh.pop %v1361
        %v1426 = vtanh.pop %v1362
        %v1427 = vtanh.pop %v1363
        %v1428 = vtanh.pop %v1364
        %v1429 = vtanh.pop %v1365
        %v1430 = vtanh.pop %v1366
        %v1431 = vtanh.pop %v1367
        %v1432 = vtanh.pop %v1368
        %v1433 = vtanh.pop %v1369
        %v1434 = vtanh.pop %v1370
        %v1435 = vtanh.pop %v1371
        %v1436 = vtanh.pop %v1372
        %v1437 = vtanh.pop %v1373
        %v1438 = vtanh.pop %v1374
        %v1439 = vtanh.pop %v1375
        %v1440 = vtanh.pop %v1376
        %v1441 = vtanh.pop %v1377
        %v1442 = vtanh.pop %v1378
        %v1443 = vtanh.pop %v1379
        %v1444 = vtanh.pop %v1380
        %v1445 = vtanh.pop %v1381
        %v1446 = vtanh.pop %v1382
        %v1447 = vtanh.pop %v1383
        %v1448 = vtanh.pop %v1384
        %v1449 = vtanh.pop %v1385
        %v1450 = vtanh.pop %v1386
        %v1451 = vtanh.pop %v1387
        %v1452 = vtanh.pop %v1388
        %v1453 = vtanh.pop %v1389
        %v1454 = vtanh.pop %v1390
        %v1455 = vtanh.pop %v1391
        %v1456 = vtanh.pop %v1392
        %v1457 = vtanh.pop %v1393
        %v1458 = vtanh.pop %v1394
        %v1459 = vtanh.pop %v1395
        %v1460 = vtanh.pop %v1396
        %v1461 = vtanh.pop %v1397
        %v1462 = vtanh.pop %v1398
        %v1463 = vtanh.pop %v1399
        %v1464 = vtanh.pop %v1400
        %v1465 = vtanh.pop %v1401
        %v1466 = vtanh.pop %v1402
        %v1467 = vtanh.pop %v1403
        %v1468 = vtanh.pop %v1404
        %v1469 = vtanh.pop %v1405
        %v1470 = vtanh.pop %v1406
        %v1471 = vtanh.pop %v1407
        %v1472 = vtanh.pop %v1408
        %v1473 = vadd.f32 %v1409, 1.0
        %v1474 = vadd.f32 %v1410, 1.0
        %v1475 = vadd.f32 %v1411, 1.0
        %v1476 = vadd.f32 %v1412, 1.0
        %v1477 = vadd.f32 %v1413, 1.0
        %v1478 = vadd.f32 %v1414, 1.0
        %v1479 = vadd.f32 %v1415, 1.0
        %v1480 = vadd.f32 %v1416, 1.0
        %v1481 = vadd.f32 %v1417, 1.0
        %v1482 = vadd.f32 %v1418, 1.0
        %v1483 = vadd.f32 %v1419, 1.0
        %v1484 = vadd.f32 %v1420, 1.0
        %v1485 = vadd.f32 %v1421, 1.0
        %v1486 = vadd.f32 %v1422, 1.0
        %v1487 = vadd.f32 %v1423, 1.0
        %v1488 = vadd.f32 %v1424, 1.0
        %v1489 = vadd.f32 %v1425, 1.0
        %v1490 = vadd.f32 %v1426, 1.0
        %v1491 = vadd.f32 %v1427, 1.0
        %v1492 = vadd.f32 %v1428, 1.0
        %v1493 = vadd.f32 %v1429, 1.0
        %v1494 = vadd.f32 %v1430, 1.0
        %v1495 = vadd.f32 %v1431, 1.0
        %v1496 = vadd.f32 %v1432, 1.0
        %v1497 = vadd.f32 %v1433, 1.0
        %v1498 = vadd.f32 %v1434, 1.0
        %v1499 = vadd.f32 %v1435, 1.0
        %v1500 = vadd.f32 %v1436, 1.0
        %v1501 = vadd.f32 %v1437, 1.0
        %v1502 = vadd.f32 %v1438, 1.0
        %v1503 = vadd.f32 %v1439, 1.0
        %v1504 = vadd.f32 %v1440, 1.0
        %v1505 = vadd.f32 %v1441, 1.0
        %v1506 = vadd.f32 %v1442, 1.0
        %v1507 = vadd.f32 %v1443, 1.0
        %v1508 = vadd.f32 %v1444, 1.0
        %v1509 = vadd.f32 %v1445, 1.0
        %v1510 = vadd.f32 %v1446, 1.0
        %v1511 = vadd.f32 %v1447, 1.0
        %v1512 = vadd.f32 %v1448, 1.0
        %v1513 = vadd.f32 %v1449, 1.0
        %v1514 = vadd.f32 %v1450, 1.0
        %v1515 = vadd.f32 %v1451, 1.0
        %v1516 = vadd.f32 %v1452, 1.0
        %v1517 = vadd.f32 %v1453, 1.0
        %v1518 = vadd.f32 %v1454, 1.0
        %v1519 = vadd.f32 %v1455, 1.0
        %v1520 = vadd.f32 %v1456, 1.0
        %v1521 = vadd.f32 %v1457, 1.0
        %v1522 = vadd.f32 %v1458, 1.0
        %v1523 = vadd.f32 %v1459, 1.0
        %v1524 = vadd.f32 %v1460, 1.0
        %v1525 = vadd.f32 %v1461, 1.0
        %v1526 = vadd.f32 %v1462, 1.0
        %v1527 = vadd.f32 %v1463, 1.0
        %v1528 = vadd.f32 %v1464, 1.0
        %v1529 = vadd.f32 %v1465, 1.0
        %v1530 = vadd.f32 %v1466, 1.0
        %v1531 = vadd.f32 %v1467, 1.0
        %v1532 = vadd.f32 %v1468, 1.0
        %v1533 = vadd.f32 %v1469, 1.0
        %v1534 = vadd.f32 %v1470, 1.0
        %v1535 = vadd.f32 %v1471, 1.0
        %v1536 = vadd.f32 %v1472, 1.0
        %v1537 = vmul.f32 %v1473, 0.5
        %v1538 = vmul.f32 %v1474, 0.5
        %v1539 = vmul.f32 %v1475, 0.5
        %v1540 = vmul.f32 %v1476, 0.5
        %v1541 = vmul.f32 %v1477, 0.5
        %v1542 = vmul.f32 %v1478, 0.5
        %v1543 = vmul.f32 %v1479, 0.5
        %v1544 = vmul.f32 %v1480, 0.5
        %v1545 = vmul.f32 %v1481, 0.5
        %v1546 = vmul.f32 %v1482, 0.5
        %v1547 = vmul.f32 %v1483, 0.5
        %v1548 = vmul.f32 %v1484, 0.5
        %v1549 = vmul.f32 %v1485, 0.5
        %v1550 = vmul.f32 %v1486, 0.5
        %v1551 = vmul.f32 %v1487, 0.5
        %v1552 = vmul.f32 %v1488, 0.5
        %v1553 = vmul.f32 %v1489, 0.5
        %v1554 = vmul.f32 %v1490, 0.5
        %v1555 = vmul.f32 %v1491, 0.5
        %v1556 = vmul.f32 %v1492, 0.5
        %v1557 = vmul.f32 %v1493, 0.5
        %v1558 = vmul.f32 %v1494, 0.5
        %v1559 = vmul.f32 %v1495, 0.5
        %v1560 = vmul.f32 %v1496, 0.5
        %v1561 = vmul.f32 %v1497, 0.5
        %v1562 = vmul.f32 %v1498, 0.5
        %v1563 = vmul.f32 %v1499, 0.5
        %v1564 = vmul.f32 %v1500, 0.5
        %v1565 = vmul.f32 %v1501, 0.5
        %v1566 = vmul.f32 %v1502, 0.5
        %v1567 = vmul.f32 %v1503, 0.5
        %v1568 = vmul.f32 %v1504, 0.5
        %v1569 = vmul.f32 %v1505, 0.5
        %v1570 = vmul.f32 %v1506, 0.5
        %v1571 = vmul.f32 %v1507, 0.5
        %v1572 = vmul.f32 %v1508, 0.5
        %v1573 = vmul.f32 %v1509, 0.5
        %v1574 = vmul.f32 %v1510, 0.5
        %v1575 = vmul.f32 %v1511, 0.5
        %v1576 = vmul.f32 %v1512, 0.5
        %v1577 = vmul.f32 %v1513, 0.5
        %v1578 = vmul.f32 %v1514, 0.5
        %v1579 = vmul.f32 %v1515, 0.5
        %v1580 = vmul.f32 %v1516, 0.5
        %v1581 = vmul.f32 %v1517, 0.5
        %v1582 = vmul.f32 %v1518, 0.5
        %v1583 = vmul.f32 %v1519, 0.5
        %v1584 = vmul.f32 %v1520, 0.5
        %v1585 = vmul.f32 %v1521, 0.5
        %v1586 = vmul.f32 %v1522, 0.5
        %v1587 = vmul.f32 %v1523, 0.5
        %v1588 = vmul.f32 %v1524, 0.5
        %v1589 = vmul.f32 %v1525, 0.5
        %v1590 = vmul.f32 %v1526, 0.5
        %v1591 = vmul.f32 %v1527, 0.5
        %v1592 = vmul.f32 %v1528, 0.5
        %v1593 = vmul.f32 %v1529, 0.5
        %v1594 = vmul.f32 %v1530, 0.5
        %v1595 = vmul.f32 %v1531, 0.5
        %v1596 = vmul.f32 %v1532, 0.5
        %v1597 = vmul.f32 %v1533, 0.5
        %v1598 = vmul.f32 %v1534, 0.5
        %v1599 = vmul.f32 %v1535, 0.5
        %v1600 = vmul.f32 %v1536, 0.5
        %v1601 = vmul.f32 %v903, %v1537
        %v1602 = vmul.f32 %v952, %v1538
        %v1603 = vmul.f32 %v1001, %v1539
        %v1604 = vmul.f32 %v1050, %v1540
        %v1605 = vmul.f32 %v905, %v1541
        %v1606 = vmul.f32 %v954, %v1542
        %v1607 = vmul.f32 %v1003, %v1543
        %v1608 = vmul.f32 %v1052, %v1544
        %v1609 = vmul.f32 %v908, %v1545
        %v1610 = vmul.f32 %v957, %v1546
        %v1611 = vmul.f32 %v1006, %v1547
        %v1612 = vmul.f32 %v1055, %v1548
        %v1613 = vmul.f32 %v910, %v1549
        %v1614 = vmul.f32 %v959, %v1550
        %v1615 = vmul.f32 %v1008, %v1551
        %v1616 = vmul.f32 %v1057, %v1552
        %v1617 = vmul.f32 %v913, %v1553
        %v1618 = vmul.f32 %v962, %v1554
        %v1619 = vmul.f32 %v1011, %v1555
        %v1620 = vmul.f32 %v1060, %v1556
        %v1621 = vmul.f32 %v915, %v1557
        %v1622 = vmul.f32 %v964, %v1558
        %v1623 = vmul.f32 %v1013, %v1559
        %v1624 = vmul.f32 %v1062, %v1560
        %v1625 = vmul.f32 %v918, %v1561
        %v1626 = vmul.f32 %v967, %v1562
        %v1627 = vmul.f32 %v1016, %v1563
        %v1628 = vmul.f32 %v1065, %v1564
        %v1629 = vmul.f32 %v920, %v1565
        %v1630 = vmul.f32 %v969, %v1566
        %v1631 = vmul.f32 %v1018, %v1567
        %v1632 = vmul.f32 %v1067, %v1568
        %v1633 = vmul.f32 %v923, %v1569
        %v1634 = vmul.f32 %v972, %v1570
        %v1635 = vmul.f32 %v1021, %v1571
        %v1636 = vmul.f32 %v1070, %v1572
        %v1637 = vmul.f32 %v925, %v1573
        %v1638 = vmul.f32 %v974, %v1574
        %v1639 = vmul.f32 %v1023, %v1575
        %v1640 = vmul.f32 %v1072, %v1576
        %v1641 = vmul.f32 %v928, %v1577
        %v1642 = vmul.f32 %v977, %v1578
        %v1643 = vmul.f32 %v1026, %v1579
        %v1644 = vmul.f32 %v1075, %v1580
        %v1645 = vmul.f32 %v930, %v1581
        %v1646 = vmul.f32 %v979, %v1582
        %v1647 = vmul.f32 %v1028, %v1583
        %v1648 = vmul.f32 %v1077, %v1584
        %v1649 = vmul.f32 %v933, %v1585
        %v1650 = vmul.f32 %v982, %v1586
        %v1651 = vmul.f32 %v1031, %v1587
        %v1652 = vmul.f32 %v1080, %v1588
        %v1653 = vmul.f32 %v935, %v1589
        %v1654 = vmul.f32 %v984, %v1590
        %v1655 = vmul.f32 %v1033, %v1591
        %v1656 = vmul.f32 %v1082, %v1592
        %v1657 = vmul.f32 %v938, %v1593
        %v1658 = vmul.f32 %v987, %v1594
        %v1659 = vmul.f32 %v1036, %v1595
        %v1660 = vmul.f32 %v1085, %v1596
        %v1661 = vmul.f32 %v940, %v1597
        %v1662 = vmul.f32 %v989, %v1598
        %v1663 = vmul.f32 %v1038, %v1599
        %v1664 = vmul.f32 %v1087, %v1600
        %v1665 = vpack.c.bf16 %v1605, %v1601
        %v1666 = vpack.c.bf16 %v1606, %v1602
        %v1667 = vpack.c.bf16 %v1607, %v1603
        %v1668 = vpack.c.bf16 %v1608, %v1604
        %v1669 = vpack.c.bf16 %v1613, %v1609
        %v1670 = vpack.c.bf16 %v1614, %v1610
        %v1671 = vpack.c.bf16 %v1615, %v1611
        %v1672 = vpack.c.bf16 %v1616, %v1612
        %v1673 = vpack.c.bf16 %v1621, %v1617
        %v1674 = vpack.c.bf16 %v1622, %v1618
        %v1675 = vpack.c.bf16 %v1623, %v1619
        %v1676 = vpack.c.bf16 %v1624, %v1620
        %v1677 = vpack.c.bf16 %v1629, %v1625
        %v1678 = vpack.c.bf16 %v1630, %v1626
        %v1679 = vpack.c.bf16 %v1631, %v1627
        %v1680 = vpack.c.bf16 %v1632, %v1628
        %v1681 = vpack.c.bf16 %v1637, %v1633
        %v1682 = vpack.c.bf16 %v1638, %v1634
        %v1683 = vpack.c.bf16 %v1639, %v1635
        %v1684 = vpack.c.bf16 %v1640, %v1636
        %v1685 = vpack.c.bf16 %v1645, %v1641
        %v1686 = vpack.c.bf16 %v1646, %v1642
        %v1687 = vpack.c.bf16 %v1647, %v1643
        %v1688 = vpack.c.bf16 %v1648, %v1644
        %v1689 = vpack.c.bf16 %v1653, %v1649
        %v1690 = vpack.c.bf16 %v1654, %v1650
        %v1691 = vpack.c.bf16 %v1655, %v1651
        %v1692 = vpack.c.bf16 %v1656, %v1652
        %v1693 = vpack.c.bf16 %v1661, %v1657
        %v1694 = vpack.c.bf16 %v1662, %v1658
        %v1695 = vpack.c.bf16 %v1663, %v1659
        %v1696 = vpack.c.bf16 %v1664, %v1660
        %v1697 = vld [vmem:[#allocation11] sm:$0xf]
        %v1698 = vld [vmem:[#allocation11 + $0x4] sm:$0xf]
        %v1699 = vld [vmem:[#allocation11 + $0x8] sm:$0xf]
        %v1700 = vld [vmem:[#allocation11 + $0xc] sm:$0xf]
        %v1701 = vld [vmem:[#allocation11 + $0x10] sm:$0xf]
        %v1702 = vld [vmem:[#allocation11 + $0x14] sm:$0xf]
        %v1703 = vld [vmem:[#allocation11 + $0x18] sm:$0xf]
        %v1704 = vld [vmem:[#allocation11 + $0x1c] sm:$0xf]
        %v1705 = vld [vmem:[#allocation11 + $0x20] sm:$0xf]
        %v1706 = vld [vmem:[#allocation11 + $0x24] sm:$0xf]
        %v1707 = vld [vmem:[#allocation11 + $0x28] sm:$0xf]
        %v1708 = vld [vmem:[#allocation11 + $0x2c] sm:$0xf]
        %v1709 = vld [vmem:[#allocation11 + $0x30] sm:$0xf]
        %v1710 = vld [vmem:[#allocation11 + $0x34] sm:$0xf]
        %v1711 = vld [vmem:[#allocation11 + $0x38] sm:$0xf]
        %v1712 = vld [vmem:[#allocation11 + $0x3c] sm:$0xf]
        %v1713 = vld [vmem:[#allocation11 + $0x40] sm:$0xf]
        %v1714 = vld [vmem:[#allocation11 + $0x44] sm:$0xf]
        %v1715 = vld [vmem:[#allocation11 + $0x48] sm:$0xf]
        %v1716 = vld [vmem:[#allocation11 + $0x4c] sm:$0xf]
        %v1717 = vld [vmem:[#allocation11 + $0x50] sm:$0xf]
        %v1718 = vld [vmem:[#allocation11 + $0x54] sm:$0xf]
        %v1719 = vld [vmem:[#allocation11 + $0x58] sm:$0xf]
        %v1720 = vld [vmem:[#allocation11 + $0x5c] sm:$0xf]
        %v1721 = vld [vmem:[#allocation11 + $0x60] sm:$0xf]
        %v1722 = vld [vmem:[#allocation11 + $0x64] sm:$0xf]
        %v1723 = vld [vmem:[#allocation11 + $0x68] sm:$0xf]
        %v1724 = vld [vmem:[#allocation11 + $0x6c] sm:$0xf]
        %v1725 = vld [vmem:[#allocation11 + $0x70] sm:$0xf]
        %v1726 = vld [vmem:[#allocation11 + $0x74] sm:$0xf]
        %v1727 = vld [vmem:[#allocation11 + $0x78] sm:$0xf]
        %v1728 = vld [vmem:[#allocation11 + $0x7c] sm:$0xf]
        %v1729 = vld [vmem:[#allocation11 + $0x80] sm:$0xf]
        %v1730 = vld [vmem:[#allocation11 + $0x84] sm:$0xf]
        %v1731 = vld [vmem:[#allocation11 + $0x88] sm:$0xf]
        %v1732 = vld [vmem:[#allocation11 + $0x8c] sm:$0xf]
        %v1733 = vld [vmem:[#allocation11 + $0x90] sm:$0xf]
        %v1734 = vld [vmem:[#allocation11 + $0x94] sm:$0xf]
        %v1735 = vld [vmem:[#allocation11 + $0x98] sm:$0xf]
        %v1736 = vld [vmem:[#allocation11 + $0x9c] sm:$0xf]
        %v1737 = vld [vmem:[#allocation11 + $0xa0] sm:$0xf]
        %v1738 = vld [vmem:[#allocation11 + $0xa4] sm:$0xf]
        %v1739 = vld [vmem:[#allocation11 + $0xa8] sm:$0xf]
        %v1740 = vld [vmem:[#allocation11 + $0xac] sm:$0xf]
        %v1741 = vld [vmem:[#allocation11 + $0xb0] sm:$0xf]
        %v1742 = vld [vmem:[#allocation11 + $0xb4] sm:$0xf]
        %v1743 = vld [vmem:[#allocation11 + $0xb8] sm:$0xf]
        %v1744 = vld [vmem:[#allocation11 + $0xbc] sm:$0xf]
        %v1745 = vld [vmem:[#allocation11 + $0xc0] sm:$0xf]
        %v1746 = vld [vmem:[#allocation11 + $0xc4] sm:$0xf]
        %v1747 = vld [vmem:[#allocation11 + $0xc8] sm:$0xf]
        %v1748 = vld [vmem:[#allocation11 + $0xcc] sm:$0xf]
        %v1749 = vld [vmem:[#allocation11 + $0xd0] sm:$0xf]
        %v1750 = vld [vmem:[#allocation11 + $0xd4] sm:$0xf]
        %v1751 = vld [vmem:[#allocation11 + $0xd8] sm:$0xf]
        %v1752 = vld [vmem:[#allocation11 + $0xdc] sm:$0xf]
        %v1753 = vld [vmem:[#allocation11 + $0xe0] sm:$0xf]
        %v1754 = vld [vmem:[#allocation11 + $0xe4] sm:$0xf]
        %v1755 = vld [vmem:[#allocation11 + $0xe8] sm:$0xf]
        %v1756 = vld [vmem:[#allocation11 + $0xec] sm:$0xf]
        %v1757 = vld [vmem:[#allocation11 + $0xf0] sm:$0xf]
        %v1758 = vld [vmem:[#allocation11 + $0xf4] sm:$0xf]
        %v1759 = vld [vmem:[#allocation11 + $0xf8] sm:$0xf]
        %v1760 = vld [vmem:[#allocation11 + $0xfc] sm:$0xf]
        %v1761 = vperm.slane %v384, 4
        %v1826 = vunpack.c.l.b16 %v1697
        %v1827 = vunpack.c.l.b16 %v1698
        %v1828 = vunpack.c.l.b16 %v1699
        %v1829 = vunpack.c.l.b16 %v1700
        %v1830 = vunpack.c.l.b16 %v1701
        %v1831 = vunpack.c.l.b16 %v1702
        %v1832 = vunpack.c.l.b16 %v1703
        %v1833 = vunpack.c.l.b16 %v1704
        %v1834 = vunpack.c.l.b16 %v1705
        %v1835 = vunpack.c.l.b16 %v1706
        %v1836 = vunpack.c.l.b16 %v1707
        %v1837 = vunpack.c.l.b16 %v1708
        %v1838 = vunpack.c.l.b16 %v1709
        %v1839 = vunpack.c.l.b16 %v1710
        %v1840 = vunpack.c.l.b16 %v1711
        %v1841 = vunpack.c.l.b16 %v1712
        %v1842 = vunpack.c.l.b16 %v1713
        %v1843 = vunpack.c.l.b16 %v1714
        %v1844 = vunpack.c.l.b16 %v1715
        %v1845 = vunpack.c.l.b16 %v1716
        %v1846 = vunpack.c.l.b16 %v1717
        %v1847 = vunpack.c.l.b16 %v1718
        %v1848 = vunpack.c.l.b16 %v1719
        %v1849 = vunpack.c.l.b16 %v1720
        %v1850 = vunpack.c.l.b16 %v1721
        %v1851 = vunpack.c.l.b16 %v1722
        %v1852 = vunpack.c.l.b16 %v1723
        %v1853 = vunpack.c.l.b16 %v1724
        %v1854 = vunpack.c.l.b16 %v1725
        %v1855 = vunpack.c.l.b16 %v1726
        %v1856 = vunpack.c.l.b16 %v1727
        %v1857 = vunpack.c.l.b16 %v1728
        %v1858 = vunpack.c.l.b16 %v1729
        %v1859 = vunpack.c.l.b16 %v1730
        %v1860 = vunpack.c.l.b16 %v1731
        %v1861 = vunpack.c.l.b16 %v1732
        %v1862 = vunpack.c.l.b16 %v1733
        %v1863 = vunpack.c.l.b16 %v1734
        %v1864 = vunpack.c.l.b16 %v1735
        %v1865 = vunpack.c.l.b16 %v1736
        %v1866 = vunpack.c.l.b16 %v1737
        %v1867 = vunpack.c.l.b16 %v1738
        %v1868 = vunpack.c.l.b16 %v1739
        %v1869 = vunpack.c.l.b16 %v1740
        %v1870 = vunpack.c.l.b16 %v1741
        %v1871 = vunpack.c.l.b16 %v1742
        %v1872 = vunpack.c.l.b16 %v1743
        %v1873 = vunpack.c.l.b16 %v1744
        %v1874 = vunpack.c.l.b16 %v1745
        %v1875 = vunpack.c.l.b16 %v1746
        %v1876 = vunpack.c.l.b16 %v1747
        %v1877 = vunpack.c.l.b16 %v1748
        %v1878 = vunpack.c.l.b16 %v1749
        %v1879 = vunpack.c.l.b16 %v1750
        %v1880 = vunpack.c.l.b16 %v1751
        %v1881 = vunpack.c.l.b16 %v1752
        %v1882 = vunpack.c.l.b16 %v1753
        %v1883 = vunpack.c.l.b16 %v1754
        %v1884 = vunpack.c.l.b16 %v1755
        %v1885 = vunpack.c.l.b16 %v1756
        %v1886 = vunpack.c.l.b16 %v1757
        %v1887 = vunpack.c.l.b16 %v1758
        %v1888 = vunpack.c.l.b16 %v1759
        %v1889 = vunpack.c.l.b16 %v1760
        %v1890 = vpack.c.b16 %v1827, %v1826
        %v1891 = vpack.c.b16 %v1829, %v1828
        %v1892 = vpack.c.b16 %v1831, %v1830
        %v1893 = vpack.c.b16 %v1833, %v1832
        %v1894 = vpack.c.b16 %v1835, %v1834
        %v1895 = vpack.c.b16 %v1837, %v1836
        %v1896 = vpack.c.b16 %v1839, %v1838
        %v1897 = vpack.c.b16 %v1841, %v1840
        %v1898 = vpack.c.b16 %v1843, %v1842
        %v1899 = vpack.c.b16 %v1845, %v1844
        %v1900 = vpack.c.b16 %v1847, %v1846
        %v1901 = vpack.c.b16 %v1849, %v1848
        %v1902 = vpack.c.b16 %v1851, %v1850
        %v1903 = vpack.c.b16 %v1853, %v1852
        %v1904 = vpack.c.b16 %v1855, %v1854
        %v1905 = vpack.c.b16 %v1857, %v1856
        %v1906 = vpack.c.b16 %v1859, %v1858
        %v1907 = vpack.c.b16 %v1861, %v1860
        %v1908 = vpack.c.b16 %v1863, %v1862
        %v1909 = vpack.c.b16 %v1865, %v1864
        %v1910 = vpack.c.b16 %v1867, %v1866
        %v1911 = vpack.c.b16 %v1869, %v1868
        %v1912 = vpack.c.b16 %v1871, %v1870
        %v1913 = vpack.c.b16 %v1873, %v1872
        %v1914 = vpack.c.b16 %v1875, %v1874
        %v1915 = vpack.c.b16 %v1877, %v1876
        %v1916 = vpack.c.b16 %v1879, %v1878
        %v1917 = vpack.c.b16 %v1881, %v1880
        %v1918 = vpack.c.b16 %v1883, %v1882
        %v1919 = vpack.c.b16 %v1885, %v1884
        %v1920 = vpack.c.b16 %v1887, %v1886
        %v1921 = vpack.c.b16 %v1889, %v1888
        %1954 = vmatpush.bf16.msra.mxu0 %v1897
        %1955 = vmatpush.bf16.msra.mxu0 %v1896
        %1956 = vmatpush.bf16.msra.mxu0 %v1895
        %1957 = vmatpush.bf16.msra.mxu0 %v1894
        %1958 = vmatpush.bf16.msra.mxu0 %v1893
        %1959 = vmatpush.bf16.msra.mxu0 %v1892
        %1960 = vmatpush.bf16.msra.mxu0 %v1891
        %1961 = vmatpush.bf16.msra.mxu0 %v1890
        %1962 = vmatmul.bf16.gmra.mxu0 %v1665
        %v1963 = vpop.f32.mrf.mxu0
        %v1964 = vadd.f32 %v1761, %v1963
        %v1965 = vpop.f32.mrf.mxu0
        %v1966 = vadd.f32 %v1761, %v1965
        %1967 = vmatmul.bf16.gmra.mxu0 %v1669
        %v1968 = vpop.f32.mrf.mxu0
        %v1969 = vadd.f32 %v1761, %v1968
        %v1970 = vpop.f32.mrf.mxu0
        %v1971 = vadd.f32 %v1761, %v1970
        %1972 = vmatmul.bf16.gmra.mxu0 %v1673
        %v1973 = vpop.f32.mrf.mxu0
        %v1974 = vadd.f32 %v1761, %v1973
        %v1975 = vpop.f32.mrf.mxu0
        %v1976 = vadd.f32 %v1761, %v1975
        %1977 = vmatmul.bf16.gmra.mxu0 %v1677
        %v1978 = vpop.f32.mrf.mxu0
        %v1979 = vadd.f32 %v1761, %v1978
        %v1980 = vpop.f32.mrf.mxu0
        %v1981 = vadd.f32 %v1761, %v1980
        %1982 = vmatmul.bf16.gmra.mxu0 %v1681
        %v1983 = vpop.f32.mrf.mxu0
        %v1984 = vadd.f32 %v1761, %v1983
        %v1985 = vpop.f32.mrf.mxu0
        %v1986 = vadd.f32 %v1761, %v1985
        %1987 = vmatmul.bf16.gmra.mxu0 %v1685
        %v1988 = vpop.f32.mrf.mxu0
        %v1989 = vadd.f32 %v1761, %v1988
        %v1990 = vpop.f32.mrf.mxu0
        %v1991 = vadd.f32 %v1761, %v1990
        %1992 = vmatmul.bf16.gmra.mxu0 %v1689
        %v1993 = vpop.f32.mrf.mxu0
        %v1994 = vadd.f32 %v1761, %v1993
        %v1995 = vpop.f32.mrf.mxu0
        %v1996 = vadd.f32 %v1761, %v1995
        %1997 = vmatmul.bf16.gmra.mxu0 %v1693
        %v1998 = vpop.f32.mrf.mxu0
        %v1999 = vadd.f32 %v1761, %v1998
        %v2000 = vpop.f32.mrf.mxu0
        %v2001 = vadd.f32 %v1761, %v2000
        %2002 = vdwg.mxu0
        %2003 = vmatpush.bf16.msra.mxu0 %v1905
        %2004 = vmatpush.bf16.msra.mxu0 %v1904
        %2005 = vmatpush.bf16.msra.mxu0 %v1903
        %2006 = vmatpush.bf16.msra.mxu0 %v1902
        %2007 = vmatpush.bf16.msra.mxu0 %v1901
        %2008 = vmatpush.bf16.msra.mxu0 %v1900
        %2009 = vmatpush.bf16.msra.mxu0 %v1899
        %2010 = vmatpush.bf16.msra.mxu0 %v1898
        %2011 = vmatmul.bf16.gmra.mxu0 %v1666
        %v2012 = vpop.f32.mrf.mxu0
        %v2013 = vadd.f32 %v1964, %v2012
        %v2014 = vpop.f32.mrf.mxu0
        %v2015 = vadd.f32 %v1966, %v2014
        %2016 = vmatmul.bf16.gmra.mxu0 %v1670
        %v2017 = vpop.f32.mrf.mxu0
        %v2018 = vadd.f32 %v1969, %v2017
        %v2019 = vpop.f32.mrf.mxu0
        %v2020 = vadd.f32 %v1971, %v2019
        %2021 = vmatmul.bf16.gmra.mxu0 %v1674
        %v2022 = vpop.f32.mrf.mxu0
        %v2023 = vadd.f32 %v1974, %v2022
        %v2024 = vpop.f32.mrf.mxu0
        %v2025 = vadd.f32 %v1976, %v2024
        %2026 = vmatmul.bf16.gmra.mxu0 %v1678
        %v2027 = vpop.f32.mrf.mxu0
        %v2028 = vadd.f32 %v1979, %v2027
        %v2029 = vpop.f32.mrf.mxu0
        %v2030 = vadd.f32 %v1981, %v2029
        %2031 = vmatmul.bf16.gmra.mxu0 %v1682
        %v2032 = vpop.f32.mrf.mxu0
        %v2033 = vadd.f32 %v1984, %v2032
        %v2034 = vpop.f32.mrf.mxu0
        %v2035 = vadd.f32 %v1986, %v2034
        %2036 = vmatmul.bf16.gmra.mxu0 %v1686
        %v2037 = vpop.f32.mrf.mxu0
        %v2038 = vadd.f32 %v1989, %v2037
        %v2039 = vpop.f32.mrf.mxu0
        %v2040 = vadd.f32 %v1991, %v2039
        %2041 = vmatmul.bf16.gmra.mxu0 %v1690
        %v2042 = vpop.f32.mrf.mxu0
        %v2043 = vadd.f32 %v1994, %v2042
        %v2044 = vpop.f32.mrf.mxu0
        %v2045 = vadd.f32 %v1996, %v2044
        %2046 = vmatmul.bf16.gmra.mxu0 %v1694
        %v2047 = vpop.f32.mrf.mxu0
        %v2048 = vadd.f32 %v1999, %v2047
        %v2049 = vpop.f32.mrf.mxu0
        %v2050 = vadd.f32 %v2001, %v2049
        %2051 = vdwg.mxu0
        %2052 = vmatpush.bf16.msra.mxu0 %v1913
        %2053 = vmatpush.bf16.msra.mxu0 %v1912
        %2054 = vmatpush.bf16.msra.mxu0 %v1911
        %2055 = vmatpush.bf16.msra.mxu0 %v1910
        %2056 = vmatpush.bf16.msra.mxu0 %v1909
        %2057 = vmatpush.bf16.msra.mxu0 %v1908
        %2058 = vmatpush.bf16.msra.mxu0 %v1907
        %2059 = vmatpush.bf16.msra.mxu0 %v1906
        %2060 = vmatmul.bf16.gmra.mxu0 %v1667
        %v2061 = vpop.f32.mrf.mxu0
        %v2062 = vadd.f32 %v2013, %v2061
        %v2063 = vpop.f32.mrf.mxu0
        %v2064 = vadd.f32 %v2015, %v2063
        %2065 = vmatmul.bf16.gmra.mxu0 %v1671
        %v2066 = vpop.f32.mrf.mxu0
        %v2067 = vadd.f32 %v2018, %v2066
        %v2068 = vpop.f32.mrf.mxu0
        %v2069 = vadd.f32 %v2020, %v2068
        %2070 = vmatmul.bf16.gmra.mxu0 %v1675
        %v2071 = vpop.f32.mrf.mxu0
        %v2072 = vadd.f32 %v2023, %v2071
        %v2073 = vpop.f32.mrf.mxu0
        %v2074 = vadd.f32 %v2025, %v2073
        %2075 = vmatmul.bf16.gmra.mxu0 %v1679
        %v2076 = vpop.f32.mrf.mxu0
        %v2077 = vadd.f32 %v2028, %v2076
        %v2078 = vpop.f32.mrf.mxu0
        %v2079 = vadd.f32 %v2030, %v2078
        %2080 = vmatmul.bf16.gmra.mxu0 %v1683
        %v2081 = vpop.f32.mrf.mxu0
        %v2082 = vadd.f32 %v2033, %v2081
        %v2083 = vpop.f32.mrf.mxu0
        %v2084 = vadd.f32 %v2035, %v2083
        %2085 = vmatmul.bf16.gmra.mxu0 %v1687
        %v2086 = vpop.f32.mrf.mxu0
        %v2087 = vadd.f32 %v2038, %v2086
        %v2088 = vpop.f32.mrf.mxu0
        %v2089 = vadd.f32 %v2040, %v2088
        %2090 = vmatmul.bf16.gmra.mxu0 %v1691
        %v2091 = vpop.f32.mrf.mxu0
        %v2092 = vadd.f32 %v2043, %v2091
        %v2093 = vpop.f32.mrf.mxu0
        %v2094 = vadd.f32 %v2045, %v2093
        %2095 = vmatmul.bf16.gmra.mxu0 %v1695
        %v2096 = vpop.f32.mrf.mxu0
        %v2097 = vadd.f32 %v2048, %v2096
        %v2098 = vpop.f32.mrf.mxu0
        %v2099 = vadd.f32 %v2050, %v2098
        %2100 = vdwg.mxu0
        %2101 = vmatpush.bf16.msra.mxu0 %v1921
        %2102 = vmatpush.bf16.msra.mxu0 %v1920
        %2103 = vmatpush.bf16.msra.mxu0 %v1919
        %2104 = vmatpush.bf16.msra.mxu0 %v1918
        %2105 = vmatpush.bf16.msra.mxu0 %v1917
        %2106 = vmatpush.bf16.msra.mxu0 %v1916
        %2107 = vmatpush.bf16.msra.mxu0 %v1915
        %2108 = vmatpush.bf16.msra.mxu0 %v1914
        %2109 = vmatmul.bf16.gmra.mxu0 %v1668
        %v2110 = vpop.f32.mrf.mxu0
        %v2111 = vadd.f32 %v2062, %v2110
        %v2112 = vpop.f32.mrf.mxu0
        %v2113 = vadd.f32 %v2064, %v2112
        %2114 = vmatmul.bf16.gmra.mxu0 %v1672
        %v2115 = vpop.f32.mrf.mxu0
        %v2116 = vadd.f32 %v2067, %v2115
        %v2117 = vpop.f32.mrf.mxu0
        %v2118 = vadd.f32 %v2069, %v2117
        %2119 = vmatmul.bf16.gmra.mxu0 %v1676
        %v2120 = vpop.f32.mrf.mxu0
        %v2121 = vadd.f32 %v2072, %v2120
        %v2122 = vpop.f32.mrf.mxu0
        %v2123 = vadd.f32 %v2074, %v2122
        %2124 = vmatmul.bf16.gmra.mxu0 %v1680
        %v2125 = vpop.f32.mrf.mxu0
        %v2126 = vadd.f32 %v2077, %v2125
        %v2127 = vpop.f32.mrf.mxu0
        %v2128 = vadd.f32 %v2079, %v2127
        %2129 = vmatmul.bf16.gmra.mxu0 %v1684
        %v2130 = vpop.f32.mrf.mxu0
        %v2131 = vadd.f32 %v2082, %v2130
        %v2132 = vpop.f32.mrf.mxu0
        %v2133 = vadd.f32 %v2084, %v2132
        %2134 = vmatmul.bf16.gmra.mxu0 %v1688
        %v2135 = vpop.f32.mrf.mxu0
        %v2136 = vadd.f32 %v2087, %v2135
        %v2137 = vpop.f32.mrf.mxu0
        %v2138 = vadd.f32 %v2089, %v2137
        %2139 = vmatmul.bf16.gmra.mxu0 %v1692
        %v2140 = vpop.f32.mrf.mxu0
        %v2141 = vadd.f32 %v2092, %v2140
        %v2142 = vpop.f32.mrf.mxu0
        %v2143 = vadd.f32 %v2094, %v2142
        %2144 = vmatmul.bf16.gmra.mxu0 %v1696
        %v2145 = vpop.f32.mrf.mxu0
        %v2146 = vadd.f32 %v2097, %v2145
        %v2147 = vpop.f32.mrf.mxu0
        %v2148 = vadd.f32 %v2099, %v2147
        %2149 = vdwg.mxu0
        %v2150 = vperm.slane %v384, 6
        %v2151 = vmul.f32 %v2150, %v2111
        %v2152 = vmul.f32 %v2150, %v2113
        %v2153 = vmul.f32 %v2150, %v2116
        %v2154 = vmul.f32 %v2150, %v2118
        %v2155 = vmul.f32 %v2150, %v2121
        %v2156 = vmul.f32 %v2150, %v2123
        %v2157 = vmul.f32 %v2150, %v2126
        %v2158 = vmul.f32 %v2150, %v2128
        %v2159 = vmul.f32 %v2150, %v2131
        %v2160 = vmul.f32 %v2150, %v2133
        %v2161 = vmul.f32 %v2150, %v2136
        %v2162 = vmul.f32 %v2150, %v2138
        %v2163 = vmul.f32 %v2150, %v2141
        %v2164 = vmul.f32 %v2150, %v2143
        %v2165 = vmul.f32 %v2150, %v2146
        %v2166 = vmul.f32 %v2150, %v2148
        %v2167 = vadd.f32 %v633, %v2151
        %v2168 = vadd.f32 %v634, %v2152
        %v2169 = vadd.f32 %v635, %v2153
        %v2170 = vadd.f32 %v636, %v2154
        %v2171 = vadd.f32 %v637, %v2155
        %v2172 = vadd.f32 %v638, %v2156
        %v2173 = vadd.f32 %v639, %v2157
        %v2174 = vadd.f32 %v640, %v2158
        %v2175 = vadd.f32 %v641, %v2159
        %v2176 = vadd.f32 %v642, %v2160
        %v2177 = vadd.f32 %v643, %v2161
        %v2178 = vadd.f32 %v644, %v2162
        %v2179 = vadd.f32 %v645, %v2163
        %v2180 = vadd.f32 %v646, %v2164
        %v2181 = vadd.f32 %v647, %v2165
        %v2182 = vadd.f32 %v648, %v2166
        %2183 = vst [vmem:[%s380] sm:$0xff] %v2167
        %2184 = vst [vmem:[%s380 + $0x8] sm:$0xff] %v2168
        %2185 = vst [vmem:[%s380 + $0x10] sm:$0xff] %v2169
        %2186 = vst [vmem:[%s380 + $0x18] sm:$0xff] %v2170
        %2187 = vst [vmem:[%s380 + $0x20] sm:$0xff] %v2171
        %2188 = vst [vmem:[%s380 + $0x28] sm:$0xff] %v2172
        %2189 = vst [vmem:[%s380 + $0x30] sm:$0xff] %v2173
        %2190 = vst [vmem:[%s380 + $0x38] sm:$0xff] %v2174
        %2191 = vst [vmem:[%s380 + $0x40] sm:$0xff] %v2175
        %2192 = vst [vmem:[%s380 + $0x48] sm:$0xff] %v2176
        %2193 = vst [vmem:[%s380 + $0x50] sm:$0xff] %v2177
        %2194 = vst [vmem:[%s380 + $0x58] sm:$0xff] %v2178
        %2195 = vst [vmem:[%s380 + $0x60] sm:$0xff] %v2179
        %2196 = vst [vmem:[%s380 + $0x68] sm:$0xff] %v2180
        %2197 = vst [vmem:[%s380 + $0x70] sm:$0xff] %v2181
        %2198 = vst [vmem:[%s380 + $0x78] sm:$0xff] %v2182
        %s2199 = sand.u32 %s187, 1
        %s2200 = scalar_lea.sflag [#allocation4], %s2199
        %s2201 = sand.u32 %s187, 1
        %s2202 = smul.addr %s2201, 128
        %s2203 = scalar_lea.vmem [#allocation13], %s2202
        // Predicated region
        $region73: #{tpu_custom_call.1} parent=47 // pred_check
          %p2204 = pneg %p197
        $region74: #{tpu_custom_call.1} parent=47 // pred_check_branch
          %2206 = sbr.rel (%p2204) target = $region76
        $region75: #{tpu_custom_call.1} parent=47 // pred_region
          %s2207 = smul.u32 4, %s27
          %2209 = vsyncadd %s2200, 0
          %s2210 = smul.addr %s2207, 4
          %s2211 = smul.addr %s2210, 8
          %s2212 = scalar_lea.hbm %s7, %s2211
          %s2213 = sshll.u32 %s2203, 4
          %s2214 = int_to_ptr.vmem [resolvable:$true] %s2213
          %s2215 = sshll.u32 %s2212, 4
          %s2216 = int_to_ptr.hbm [resolvable:$true] %s2215
          %2221 = dma.vmem_to_hbm [thread:$0]  %s2214, 2048, %s2216, %s2200, 128, 128, 8
        $region76: #{tpu_custom_call.1} parent=47 // pred_fallthru
          _
      $region48: #{tpu_custom_call.1} parent=5 // pred_fallthru
        _
      %p2222 = scmp.le.s32.totalorder 2, %s22
      // Predicated region
      $region77: #{tpu_custom_call.1} parent=5 // pred_check
        %p2223 = pneg %p2222
      $region78: #{tpu_custom_call.1} parent=5 // pred_check_branch
        %2225 = sbr.rel (%p2223) target = $region80
      $region79: #{tpu_custom_call.1} parent=5 // pred_region
        %s2226 = ssub.s32 %s22, 2
        // Predicated region
        $region81: #{tpu_custom_call.1} parent=79 // pred_check
          %p2227 = pneg %p203
        $region82: #{tpu_custom_call.1} parent=79 // pred_check_branch
          %2229 = sbr.rel (%p2227) target = $region84
        $region83: #{tpu_custom_call.1} parent=79 // pred_region
          %s2230 = sand.u32 %s188, 1
          %s2231 = scalar_lea.sflag [#allocation4], %s2230
          %s2232 = sand.u32 %s188, 1
          %s2233 = smul.addr %s2232, 128
          %s2234 = scalar_lea.vmem [#allocation13], %s2233
          %2236 = dma.done %s2231, 2048
        $region84: #{tpu_custom_call.1} parent=79 // pred_fallthru
          _
      $region80: #{tpu_custom_call.1} parent=5 // pred_fallthru
        _
    $region6: #{tpu_custom_call.1} parent=1 // loop_footer
      %s26 = sadd.s32 1, %s22
    $region7: #{tpu_custom_call.1} parent=1 // loop_footer_branch
      %21 = sbr.rel target = $region3
    $region8: #{tpu_custom_call.1} parent=1 // loop_exit
      _
    %2237 = vsyncpa [#allocation3], 1
    %s2238 = scalar_lea.sflag [#allocation3], 1
    %2239 = vsyncpa %s2238, 1
    %2240 = vsyncpa [#allocation6], 1
    %2241 = vsyncpa [#allocation9], 1
    %2242 = vsyncpa [#allocation12], 1
    %2243 = vsyncpa [#allocation4], 1
    %s2244 = scalar_lea.sflag [#allocation4], 1
    %2245 = vsyncpa %s2244, 1

</llo_original>
